<compile_context>
chip_gen: v7x
topology: tpu7x:2x2x1
jax: 0.10.0
libtpu: 0.0.40
codegen_flags: <defaults>
</compile_context>

<pallas_src>
import jax
import jax.numpy as jnp
from jax.experimental import pallas as pl
from jax.experimental.pallas import tpu as pltpu

SUB = 128          # rows per sub-tile (one chain keeps ~48 live vregs -> no spills)
PAIR = 2 * SUB     # two independent sub-tiles are traced per inner step (MXU/VPU interleave)


def _round_up(x, m):
    return ((x + m - 1) // m) * m


def _make_kernel(n_pairs, sub):
    """Build the fused 8-layer MLP kernel for a (n_pairs * 2 * sub, P) batch tile."""

    def kernel(x_ref, w0_ref, w_ref, b_ref, out_ref):
        # x_ref  : (TB, indim)   bf16  activations (natural input width)
        # w0_ref : (indim, P)    bf16  first encoder weight
        # w_ref  : (7, P, P)     bf16  remaining weights (decoder-final columns pre-shifted)
        # b_ref  : (8, 1, P)     f32   biases (decoder-final bias pre-shifted)
        # out_ref: (TB, P)       f32   merged output: g in lanes [0:obsdim), x0 in
        #                              lanes [obsdim:obsdim+indim)
        w0 = w0_ref[...]  # tiny (indim x P) bf16; hoisted once per grid step

        def chain(row0):
            """One 128-row sub-tile through encoder+decoder; returns merged (sub, P) f32."""
            h = x_ref[pl.ds(row0, sub), :]                                   # (sub, indim) bf16
            # encoder layer 0 (natural K = indim)
            z = jnp.dot(h, w0, preferred_element_type=jnp.float32) + b_ref[0]
            h = jnp.maximum(z, 0.0).astype(jnp.bfloat16)
            # encoder layers 1,2 (+ReLU)
            for l in (1, 2):
                z = jnp.dot(h, w_ref[l - 1], preferred_element_type=jnp.float32) + b_ref[l]
                h = jnp.maximum(z, 0.0).astype(jnp.bfloat16)
            # encoder final -> g (valid lanes [0:obsdim), padded lanes exactly 0)
            g = jnp.dot(h, w_ref[2], preferred_element_type=jnp.float32) + b_ref[3]
            # decoder layers 0,1,2 (+ReLU)
            h = g.astype(jnp.bfloat16)
            for l in (4, 5, 6):
                z = jnp.dot(h, w_ref[l - 1], preferred_element_type=jnp.float32) + b_ref[l]
                h = jnp.maximum(z, 0.0).astype(jnp.bfloat16)
            # decoder final -> x0, columns already shifted to lanes [obsdim:obsdim+indim)
            x0 = jnp.dot(h, w_ref[6], preferred_element_type=jnp.float32) + b_ref[7]
            # Merge: both operands are exactly zero outside their own lane range.
            return g + x0

        # Short, statically-unrolled loop (n_pairs <= tb/256); offsets are static & 128-aligned.
        # The two chains of each pair are independent -> the LLO scheduler interleaves their
        # MXU pushes and VPU epilogues within this single basic block.
        for p in range(n_pairs):
            r0 = p * 2 * sub
            out_a = chain(r0)
            out_b = chain(r0 + sub)
            out_ref[pl.ds(r0, sub), :] = out_a
            out_ref[pl.ds(r0 + sub, sub), :] = out_b

    return kernel


def _pack_params(enc_params, dec_params, P, indim, obsdim):
    """Zero-pad weights/biases to lane width P and stack.

    Layer 0 keeps its natural input width (indim, P).  The last decoder layer's output
    columns (and bias lanes) are shifted by `obsdim` so x0 lands directly in the merged
    output slab at lanes [obsdim:obsdim+indim)."""
    params = list(enc_params) + list(dec_params)

    w0_raw, b0_raw = params[0]
    hidden = w0_raw.shape[1]
    w0 = (jnp.zeros((indim, P), jnp.float32)
          .at[:, :hidden].set(w0_raw).astype(jnp.bfloat16))

    ws = []
    bs = [jnp.zeros((P,), jnp.float32).at[:hidden].set(b0_raw.reshape(-1))]
    for li in range(1, 8):
        w, b = params[li]
        in_f, out_f = w.shape
        col0 = obsdim if li == 7 else 0
        ws.append(jnp.zeros((P, P), jnp.float32).at[:in_f, col0:col0 + out_f].set(w))
        bs.append(jnp.zeros((P,), jnp.float32).at[col0:col0 + out_f].set(b.reshape(-1)))
    w_stack = jnp.stack(ws).astype(jnp.bfloat16)   # (7, P, P) bf16
    b_stack = jnp.stack(bs).reshape(8, 1, P)       # (8, 1, P) f32
    return w0, w_stack, b_stack


def koopman_forward(x, enc_params, dec_params, *, tb=1024):
    """x: (B, indim) f32.  enc/dec params: lists of (W (in,out), b (out,)).

    Returns (g (B, obsdim) f32, x0 (B, indim) f32)."""
    assert tb % PAIR == 0, "tb must be a multiple of 256 (two 128-row sub-tiles per step)"
    B, indim = x.shape
    hidden = enc_params[0][0].shape[1]
    obsdim = enc_params[-1][0].shape[1]

    # Single lane width P covers every hidden width AND the merged (obsdim+indim) output slab.
    P = _round_up(max(hidden, indim, obsdim, indim + obsdim), 128)

    w0, w_stack, b_stack = _pack_params(enc_params, dec_params, P, indim, obsdim)

    # Batch tiling: big tiles, rounded to a multiple of 256 (keeps bf16 sublane packing clean
    # and the paired-sub-tile inner loop exact).
    tb_eff = min(tb, _round_up(B, PAIR))
    b_pad = _round_up(B, tb_eff)
    n_pairs = tb_eff // PAIR

    # Input at natural width: only rows are padded; cast to bf16 once.
    x_pad = (jnp.zeros((b_pad, indim), jnp.bfloat16)
             .at[:B, :].set(x.astype(jnp.bfloat16)))

    out = pl.pallas_call(
        _make_kernel(n_pairs, SUB),
        out_shape=jax.ShapeDtypeStruct((b_pad, P), jnp.float32),
        grid=(b_pad // tb_eff,),
        in_specs=[
            # activations: tiled over the batch
            pl.BlockSpec((tb_eff, indim), lambda i: (i, 0)),
            # first weight / packed weights / packed biases: constant index -> VMEM-resident,
            # never re-fetched across grid steps.
            pl.BlockSpec((indim, P), lambda i: (0, 0)),
            pl.BlockSpec((7, P, P), lambda i: (0, 0, 0)),
            pl.BlockSpec((8, 1, P), lambda i: (0, 0, 0)),
        ],
        out_specs=pl.BlockSpec((tb_eff, P), lambda i: (i, 0)),
        compiler_params=pltpu.CompilerParams(
            dimension_semantics=("parallel",)),   # v7x: shards grid steps across both TCs
    )(x_pad, w0, w_stack, b_stack)

    g = out[:B, :obsdim]
    x0 = out[:B, obsdim:obsdim + indim]
    return g, x0


# ------------------------- parameter init (matches torch init_nn_weights) -------------------------

def init_linear(key, in_features, out_features):
    """W ~ N(0, (2/in_features)^2), b = 0.  W stored as (in, out) (already transposed)."""
    w = (2.0 / in_features) * jax.random.normal(
        key, (in_features, out_features), dtype=jnp.float32)
    b = jnp.zeros((out_features,), dtype=jnp.float32)
    return w, b


def build_params(key, indim, obsdim, hidden=100):
    keys = jax.random.split(key, 10)
    enc = [
        init_linear(keys[0], indim, hidden),
        init_linear(keys[1], hidden, hidden),
        init_linear(keys[2], hidden, hidden),
        init_linear(keys[3], hidden, obsdim),
    ]
    dec = [
        init_linear(keys[4], obsdim, hidden),
        init_linear(keys[5], hidden, hidden),
        init_linear(keys[6], hidden, hidden),
        init_linear(keys[7], hidden, indim),
    ]
    # Koopman operator params (unused in forward; kept for parameter parity).
    k_diag = jax.random.uniform(keys[8], (obsdim,), dtype=jnp.float32)
    k_ut = 0.01 * jax.random.normal(
        keys[9], (obsdim * (obsdim - 1) // 2,), dtype=jnp.float32)
    return enc, dec, k_diag, k_ut


# ------------------------- reference (emulates the kernel's per-layer bf16 matmuls) ----------------

def reference_forward(x, enc_params, dec_params):
    def mm(h, w, b):
        return jnp.dot(h.astype(jnp.bfloat16), w.astype(jnp.bfloat16),
                       preferred_element_type=jnp.float32) + b.reshape(1, -1)

    h = x
    for i, (w, b) in enumerate(enc_params):
        h = mm(h, w, b)
        if i < len(enc_params) - 1:
            h = jnp.maximum(h, 0.0)
    g = h
    h = g
    for i, (w, b) in enumerate(dec_params):
        h = mm(h, w, b)
        if i < len(dec_params) - 1:
            h = jnp.maximum(h, 0.0)
    return g, h


if __name__ == "__main__":
    indim, obsdim, batch = 16, 8, 200   # batch not tile-aligned -> exercises row padding

    key = jax.random.PRNGKey(0)
    pkey, xkey = jax.random.split(key)
    enc_params, dec_params, _, _ = build_params(pkey, indim, obsdim)

    x = jax.random.normal(xkey, (batch, indim), dtype=jnp.float32)

    g, x0 = jax.block_until_ready(koopman_forward(x, enc_params, dec_params, tb=1024))

    g_ref, x0_ref = reference_forward(x, enc_params, dec_params)
    assert g.shape == (batch, obsdim) and x0.shape == (batch, indim)
    assert jnp.allclose(g, g_ref, atol=1e-3, rtol=1e-2), \
        f"g mismatch: max abs diff {jnp.max(jnp.abs(g - g_ref))}"
    assert jnp.allclose(x0, x0_ref, atol=1e-3, rtol=1e-2), \
        f"x0 mismatch: max abs diff {jnp.max(jnp.abs(x0 - x0_ref))}"

    print("KERNEL_OK")
</pallas_src>

<mosaic_0001>
module attributes {stable_mosaic.version = 11 : i64} {
  func.func @kernel(%arg0: i32, %arg1: memref<256x16xbf16, #tpu.memory_space<vmem>>, %arg2: memref<16x128xbf16, #tpu.memory_space<vmem>>, %arg3: memref<7x128x128xbf16, #tpu.memory_space<vmem>>, %arg4: memref<8x1x128xf32, #tpu.memory_space<vmem>>, %arg5: memref<256x128xf32, #tpu.memory_space<vmem>>) attributes {dimension_semantics = [#tpu.dimension_semantics<parallel>], iteration_bounds = array<i64: 1>, scalar_prefetch = 0 : i64, scratch_operands = 0 : i64, tpu.core_type = #tpu.core_type<tc>, window_params = [{transform_indices = @transform_0, window_bounds = array<i64: 256, 16>}, {pipeline_mode = #tpu.pipeline_mode<synchronous>, transform_indices = @transform_1, window_bounds = array<i64: 16, 128>}, {pipeline_mode = #tpu.pipeline_mode<synchronous>, transform_indices = @transform_2, window_bounds = array<i64: 7, 128, 128>}, {pipeline_mode = #tpu.pipeline_mode<synchronous>, transform_indices = @transform_3, window_bounds = array<i64: 8, 1, 128>}, {transform_indices = @transform_4, window_bounds = array<i64: 256, 128>}]} {
    %c0 = arith.constant 0 : index
    %c0_0 = arith.constant 0 : index
    %0 = vector.load %arg2[%c0, %c0_0] : memref<16x128xbf16, #tpu.memory_space<vmem>>, vector<16x128xbf16>
    %c0_1 = arith.constant 0 : index
    %c0_2 = arith.constant 0 : index
    %1 = vector.load %arg1[%c0_1, %c0_2] : memref<256x16xbf16, #tpu.memory_space<vmem>>, vector<128x16xbf16>
    %cst = arith.constant dense<0.000000e+00> : vector<128x128xf32>
    %2 = tpu.matmul %1, %0, %cst {dimension_numbers = #tpu.dot_dimension_numbers<[1], [0], [0], [1], [0, 0, 1, 1], [], []>} : vector<128x16xbf16>, vector<16x128xbf16>, vector<128x128xf32> -> vector<128x128xf32>
    %c0_3 = arith.constant 0 : index
    %c0_4 = arith.constant 0 : index
    %c0_5 = arith.constant 0 : index
    %3 = vector.load %arg4[%c0_3, %c0_4, %c0_5] : memref<8x1x128xf32, #tpu.memory_space<vmem>>, vector<1x1x128xf32>
    %4 = vector.shape_cast %3 : vector<1x1x128xf32> to vector<1x128xf32>
    %5 = vector.broadcast %4 : vector<1x128xf32> to vector<128x128xf32>
    %6 = arith.addf %2, %5 : vector<128x128xf32>
    %cst_6 = arith.constant 0.000000e+00 : f32
    %7 = vector.broadcast %cst_6 : f32 to vector<128x128xf32>
    %8 = arith.maximumf %6, %7 : vector<128x128xf32>
    %9 = arith.truncf %8 : vector<128x128xf32> to vector<128x128xbf16>
    %c0_7 = arith.constant 0 : index
    %c0_8 = arith.constant 0 : index
    %c0_9 = arith.constant 0 : index
    %10 = vector.load %arg3[%c0_7, %c0_8, %c0_9] : memref<7x128x128xbf16, #tpu.memory_space<vmem>>, vector<1x128x128xbf16>
    %11 = vector.shape_cast %10 : vector<1x128x128xbf16> to vector<128x128xbf16>
    %cst_10 = arith.constant dense<0.000000e+00> : vector<128x128xf32>
    %12 = tpu.matmul %9, %11, %cst_10 {dimension_numbers = #tpu.dot_dimension_numbers<[1], [0], [0], [1], [0, 0, 1, 1], [], []>} : vector<128x128xbf16>, vector<128x128xbf16>, vector<128x128xf32> -> vector<128x128xf32>
    %c1 = arith.constant 1 : index
    %c0_11 = arith.constant 0 : index
    %c0_12 = arith.constant 0 : index
    %13 = vector.load %arg4[%c1, %c0_11, %c0_12] : memref<8x1x128xf32, #tpu.memory_space<vmem>>, vector<1x1x128xf32>
    %14 = vector.shape_cast %13 : vector<1x1x128xf32> to vector<1x128xf32>
    %15 = vector.broadcast %14 : vector<1x128xf32> to vector<128x128xf32>
    %16 = arith.addf %12, %15 : vector<128x128xf32>
    %cst_13 = arith.constant 0.000000e+00 : f32
    %17 = vector.broadcast %cst_13 : f32 to vector<128x128xf32>
    %18 = arith.maximumf %16, %17 : vector<128x128xf32>
    %19 = arith.truncf %18 : vector<128x128xf32> to vector<128x128xbf16>
    %c1_14 = arith.constant 1 : index
    %c0_15 = arith.constant 0 : index
    %c0_16 = arith.constant 0 : index
    %20 = vector.load %arg3[%c1_14, %c0_15, %c0_16] : memref<7x128x128xbf16, #tpu.memory_space<vmem>>, vector<1x128x128xbf16>
    %21 = vector.shape_cast %20 : vector<1x128x128xbf16> to vector<128x128xbf16>
    %cst_17 = arith.constant dense<0.000000e+00> : vector<128x128xf32>
    %22 = tpu.matmul %19, %21, %cst_17 {dimension_numbers = #tpu.dot_dimension_numbers<[1], [0], [0], [1], [0, 0, 1, 1], [], []>} : vector<128x128xbf16>, vector<128x128xbf16>, vector<128x128xf32> -> vector<128x128xf32>
    %c2 = arith.constant 2 : index
    %c0_18 = arith.constant 0 : index
    %c0_19 = arith.constant 0 : index
    %23 = vector.load %arg4[%c2, %c0_18, %c0_19] : memref<8x1x128xf32, #tpu.memory_space<vmem>>, vector<1x1x128xf32>
    %24 = vector.shape_cast %23 : vector<1x1x128xf32> to vector<1x128xf32>
    %25 = vector.broadcast %24 : vector<1x128xf32> to vector<128x128xf32>
    %26 = arith.addf %22, %25 : vector<128x128xf32>
    %cst_20 = arith.constant 0.000000e+00 : f32
    %27 = vector.broadcast %cst_20 : f32 to vector<128x128xf32>
    %28 = arith.maximumf %26, %27 : vector<128x128xf32>
    %29 = arith.truncf %28 : vector<128x128xf32> to vector<128x128xbf16>
    %c2_21 = arith.constant 2 : index
    %c0_22 = arith.constant 0 : index
    %c0_23 = arith.constant 0 : index
    %30 = vector.load %arg3[%c2_21, %c0_22, %c0_23] : memref<7x128x128xbf16, #tpu.memory_space<vmem>>, vector<1x128x128xbf16>
    %31 = vector.shape_cast %30 : vector<1x128x128xbf16> to vector<128x128xbf16>
    %cst_24 = arith.constant dense<0.000000e+00> : vector<128x128xf32>
    %32 = tpu.matmul %29, %31, %cst_24 {dimension_numbers = #tpu.dot_dimension_numbers<[1], [0], [0], [1], [0, 0, 1, 1], [], []>} : vector<128x128xbf16>, vector<128x128xbf16>, vector<128x128xf32> -> vector<128x128xf32>
    %c3 = arith.constant 3 : index
    %c0_25 = arith.constant 0 : index
    %c0_26 = arith.constant 0 : index
    %33 = vector.load %arg4[%c3, %c0_25, %c0_26] : memref<8x1x128xf32, #tpu.memory_space<vmem>>, vector<1x1x128xf32>
    %34 = vector.shape_cast %33 : vector<1x1x128xf32> to vector<1x128xf32>
    %35 = vector.broadcast %34 : vector<1x128xf32> to vector<128x128xf32>
    %36 = arith.addf %32, %35 : vector<128x128xf32>
    %37 = arith.truncf %36 : vector<128x128xf32> to vector<128x128xbf16>
    %c3_27 = arith.constant 3 : index
    %c0_28 = arith.constant 0 : index
    %c0_29 = arith.constant 0 : index
    %38 = vector.load %arg3[%c3_27, %c0_28, %c0_29] : memref<7x128x128xbf16, #tpu.memory_space<vmem>>, vector<1x128x128xbf16>
    %39 = vector.shape_cast %38 : vector<1x128x128xbf16> to vector<128x128xbf16>
    %cst_30 = arith.constant dense<0.000000e+00> : vector<128x128xf32>
    %40 = tpu.matmul %37, %39, %cst_30 {dimension_numbers = #tpu.dot_dimension_numbers<[1], [0], [0], [1], [0, 0, 1, 1], [], []>} : vector<128x128xbf16>, vector<128x128xbf16>, vector<128x128xf32> -> vector<128x128xf32>
    %c4 = arith.constant 4 : index
    %c0_31 = arith.constant 0 : index
    %c0_32 = arith.constant 0 : index
    %41 = vector.load %arg4[%c4, %c0_31, %c0_32] : memref<8x1x128xf32, #tpu.memory_space<vmem>>, vector<1x1x128xf32>
    %42 = vector.shape_cast %41 : vector<1x1x128xf32> to vector<1x128xf32>
    %43 = vector.broadcast %42 : vector<1x128xf32> to vector<128x128xf32>
    %44 = arith.addf %40, %43 : vector<128x128xf32>
    %cst_33 = arith.constant 0.000000e+00 : f32
    %45 = vector.broadcast %cst_33 : f32 to vector<128x128xf32>
    %46 = arith.maximumf %44, %45 : vector<128x128xf32>
    %47 = arith.truncf %46 : vector<128x128xf32> to vector<128x128xbf16>
    %c4_34 = arith.constant 4 : index
    %c0_35 = arith.constant 0 : index
    %c0_36 = arith.constant 0 : index
    %48 = vector.load %arg3[%c4_34, %c0_35, %c0_36] : memref<7x128x128xbf16, #tpu.memory_space<vmem>>, vector<1x128x128xbf16>
    %49 = vector.shape_cast %48 : vector<1x128x128xbf16> to vector<128x128xbf16>
    %cst_37 = arith.constant dense<0.000000e+00> : vector<128x128xf32>
    %50 = tpu.matmul %47, %49, %cst_37 {dimension_numbers = #tpu.dot_dimension_numbers<[1], [0], [0], [1], [0, 0, 1, 1], [], []>} : vector<128x128xbf16>, vector<128x128xbf16>, vector<128x128xf32> -> vector<128x128xf32>
    %c5 = arith.constant 5 : index
    %c0_38 = arith.constant 0 : index
    %c0_39 = arith.constant 0 : index
    %51 = vector.load %arg4[%c5, %c0_38, %c0_39] : memref<8x1x128xf32, #tpu.memory_space<vmem>>, vector<1x1x128xf32>
    %52 = vector.shape_cast %51 : vector<1x1x128xf32> to vector<1x128xf32>
    %53 = vector.broadcast %52 : vector<1x128xf32> to vector<128x128xf32>
    %54 = arith.addf %50, %53 : vector<128x128xf32>
    %cst_40 = arith.constant 0.000000e+00 : f32
    %55 = vector.broadcast %cst_40 : f32 to vector<128x128xf32>
    %56 = arith.maximumf %54, %55 : vector<128x128xf32>
    %57 = arith.truncf %56 : vector<128x128xf32> to vector<128x128xbf16>
    %c5_41 = arith.constant 5 : index
    %c0_42 = arith.constant 0 : index
    %c0_43 = arith.constant 0 : index
    %58 = vector.load %arg3[%c5_41, %c0_42, %c0_43] : memref<7x128x128xbf16, #tpu.memory_space<vmem>>, vector<1x128x128xbf16>
    %59 = vector.shape_cast %58 : vector<1x128x128xbf16> to vector<128x128xbf16>
    %cst_44 = arith.constant dense<0.000000e+00> : vector<128x128xf32>
    %60 = tpu.matmul %57, %59, %cst_44 {dimension_numbers = #tpu.dot_dimension_numbers<[1], [0], [0], [1], [0, 0, 1, 1], [], []>} : vector<128x128xbf16>, vector<128x128xbf16>, vector<128x128xf32> -> vector<128x128xf32>
    %c6 = arith.constant 6 : index
    %c0_45 = arith.constant 0 : index
    %c0_46 = arith.constant 0 : index
    %61 = vector.load %arg4[%c6, %c0_45, %c0_46] : memref<8x1x128xf32, #tpu.memory_space<vmem>>, vector<1x1x128xf32>
    %62 = vector.shape_cast %61 : vector<1x1x128xf32> to vector<1x128xf32>
    %63 = vector.broadcast %62 : vector<1x128xf32> to vector<128x128xf32>
    %64 = arith.addf %60, %63 : vector<128x128xf32>
    %cst_47 = arith.constant 0.000000e+00 : f32
    %65 = vector.broadcast %cst_47 : f32 to vector<128x128xf32>
    %66 = arith.maximumf %64, %65 : vector<128x128xf32>
    %67 = arith.truncf %66 : vector<128x128xf32> to vector<128x128xbf16>
    %c6_48 = arith.constant 6 : index
    %c0_49 = arith.constant 0 : index
    %c0_50 = arith.constant 0 : index
    %68 = vector.load %arg3[%c6_48, %c0_49, %c0_50] : memref<7x128x128xbf16, #tpu.memory_space<vmem>>, vector<1x128x128xbf16>
    %69 = vector.shape_cast %68 : vector<1x128x128xbf16> to vector<128x128xbf16>
    %cst_51 = arith.constant dense<0.000000e+00> : vector<128x128xf32>
    %70 = tpu.matmul %67, %69, %cst_51 {dimension_numbers = #tpu.dot_dimension_numbers<[1], [0], [0], [1], [0, 0, 1, 1], [], []>} : vector<128x128xbf16>, vector<128x128xbf16>, vector<128x128xf32> -> vector<128x128xf32>
    %c7 = arith.constant 7 : index
    %c0_52 = arith.constant 0 : index
    %c0_53 = arith.constant 0 : index
    %71 = vector.load %arg4[%c7, %c0_52, %c0_53] : memref<8x1x128xf32, #tpu.memory_space<vmem>>, vector<1x1x128xf32>
    %72 = vector.shape_cast %71 : vector<1x1x128xf32> to vector<1x128xf32>
    %73 = vector.broadcast %72 : vector<1x128xf32> to vector<128x128xf32>
    %74 = arith.addf %70, %73 : vector<128x128xf32>
    %75 = arith.addf %36, %74 : vector<128x128xf32>
    %c128 = arith.constant 128 : index
    %c0_54 = arith.constant 0 : index
    %76 = vector.load %arg1[%c128, %c0_54] : memref<256x16xbf16, #tpu.memory_space<vmem>>, vector<128x16xbf16>
    %cst_55 = arith.constant dense<0.000000e+00> : vector<128x128xf32>
    %77 = tpu.matmul %76, %0, %cst_55 {dimension_numbers = #tpu.dot_dimension_numbers<[1], [0], [0], [1], [0, 0, 1, 1], [], []>} : vector<128x16xbf16>, vector<16x128xbf16>, vector<128x128xf32> -> vector<128x128xf32>
    %c0_56 = arith.constant 0 : index
    %c0_57 = arith.constant 0 : index
    %c0_58 = arith.constant 0 : index
    %78 = vector.load %arg4[%c0_56, %c0_57, %c0_58] : memref<8x1x128xf32, #tpu.memory_space<vmem>>, vector<1x1x128xf32>
    %79 = vector.shape_cast %78 : vector<1x1x128xf32> to vector<1x128xf32>
    %80 = vector.broadcast %79 : vector<1x128xf32> to vector<128x128xf32>
    %81 = arith.addf %77, %80 : vector<128x128xf32>
    %cst_59 = arith.constant 0.000000e+00 : f32
    %82 = vector.broadcast %cst_59 : f32 to vector<128x128xf32>
    %83 = arith.maximumf %81, %82 : vector<128x128xf32>
    %84 = arith.truncf %83 : vector<128x128xf32> to vector<128x128xbf16>
    %c0_60 = arith.constant 0 : index
    %c0_61 = arith.constant 0 : index
    %c0_62 = arith.constant 0 : index
    %85 = vector.load %arg3[%c0_60, %c0_61, %c0_62] : memref<7x128x128xbf16, #tpu.memory_space<vmem>>, vector<1x128x128xbf16>
    %86 = vector.shape_cast %85 : vector<1x128x128xbf16> to vector<128x128xbf16>
    %cst_63 = arith.constant dense<0.000000e+00> : vector<128x128xf32>
    %87 = tpu.matmul %84, %86, %cst_63 {dimension_numbers = #tpu.dot_dimension_numbers<[1], [0], [0], [1], [0, 0, 1, 1], [], []>} : vector<128x128xbf16>, vector<128x128xbf16>, vector<128x128xf32> -> vector<128x128xf32>
    %c1_64 = arith.constant 1 : index
    %c0_65 = arith.constant 0 : index
    %c0_66 = arith.constant 0 : index
    %88 = vector.load %arg4[%c1_64, %c0_65, %c0_66] : memref<8x1x128xf32, #tpu.memory_space<vmem>>, vector<1x1x128xf32>
    %89 = vector.shape_cast %88 : vector<1x1x128xf32> to vector<1x128xf32>
    %90 = vector.broadcast %89 : vector<1x128xf32> to vector<128x128xf32>
    %91 = arith.addf %87, %90 : vector<128x128xf32>
    %cst_67 = arith.constant 0.000000e+00 : f32
    %92 = vector.broadcast %cst_67 : f32 to vector<128x128xf32>
    %93 = arith.maximumf %91, %92 : vector<128x128xf32>
    %94 = arith.truncf %93 : vector<128x128xf32> to vector<128x128xbf16>
    %c1_68 = arith.constant 1 : index
    %c0_69 = arith.constant 0 : index
    %c0_70 = arith.constant 0 : index
    %95 = vector.load %arg3[%c1_68, %c0_69, %c0_70] : memref<7x128x128xbf16, #tpu.memory_space<vmem>>, vector<1x128x128xbf16>
    %96 = vector.shape_cast %95 : vector<1x128x128xbf16> to vector<128x128xbf16>
    %cst_71 = arith.constant dense<0.000000e+00> : vector<128x128xf32>
    %97 = tpu.matmul %94, %96, %cst_71 {dimension_numbers = #tpu.dot_dimension_numbers<[1], [0], [0], [1], [0, 0, 1, 1], [], []>} : vector<128x128xbf16>, vector<128x128xbf16>, vector<128x128xf32> -> vector<128x128xf32>
    %c2_72 = arith.constant 2 : index
    %c0_73 = arith.constant 0 : index
    %c0_74 = arith.constant 0 : index
    %98 = vector.load %arg4[%c2_72, %c0_73, %c0_74] : memref<8x1x128xf32, #tpu.memory_space<vmem>>, vector<1x1x128xf32>
    %99 = vector.shape_cast %98 : vector<1x1x128xf32> to vector<1x128xf32>
    %100 = vector.broadcast %99 : vector<1x128xf32> to vector<128x128xf32>
    %101 = arith.addf %97, %100 : vector<128x128xf32>
    %cst_75 = arith.constant 0.000000e+00 : f32
    %102 = vector.broadcast %cst_75 : f32 to vector<128x128xf32>
    %103 = arith.maximumf %101, %102 : vector<128x128xf32>
    %104 = arith.truncf %103 : vector<128x128xf32> to vector<128x128xbf16>
    %c2_76 = arith.constant 2 : index
    %c0_77 = arith.constant 0 : index
    %c0_78 = arith.constant 0 : index
    %105 = vector.load %arg3[%c2_76, %c0_77, %c0_78] : memref<7x128x128xbf16, #tpu.memory_space<vmem>>, vector<1x128x128xbf16>
    %106 = vector.shape_cast %105 : vector<1x128x128xbf16> to vector<128x128xbf16>
    %cst_79 = arith.constant dense<0.000000e+00> : vector<128x128xf32>
    %107 = tpu.matmul %104, %106, %cst_79 {dimension_numbers = #tpu.dot_dimension_numbers<[1], [0], [0], [1], [0, 0, 1, 1], [], []>} : vector<128x128xbf16>, vector<128x128xbf16>, vector<128x128xf32> -> vector<128x128xf32>
    %c3_80 = arith.constant 3 : index
    %c0_81 = arith.constant 0 : index
    %c0_82 = arith.constant 0 : index
    %108 = vector.load %arg4[%c3_80, %c0_81, %c0_82] : memref<8x1x128xf32, #tpu.memory_space<vmem>>, vector<1x1x128xf32>
    %109 = vector.shape_cast %108 : vector<1x1x128xf32> to vector<1x128xf32>
    %110 = vector.broadcast %109 : vector<1x128xf32> to vector<128x128xf32>
    %111 = arith.addf %107, %110 : vector<128x128xf32>
    %112 = arith.truncf %111 : vector<128x128xf32> to vector<128x128xbf16>
    %c3_83 = arith.constant 3 : index
    %c0_84 = arith.constant 0 : index
    %c0_85 = arith.constant 0 : index
    %113 = vector.load %arg3[%c3_83, %c0_84, %c0_85] : memref<7x128x128xbf16, #tpu.memory_space<vmem>>, vector<1x128x128xbf16>
    %114 = vector.shape_cast %113 : vector<1x128x128xbf16> to vector<128x128xbf16>
    %cst_86 = arith.constant dense<0.000000e+00> : vector<128x128xf32>
    %115 = tpu.matmul %112, %114, %cst_86 {dimension_numbers = #tpu.dot_dimension_numbers<[1], [0], [0], [1], [0, 0, 1, 1], [], []>} : vector<128x128xbf16>, vector<128x128xbf16>, vector<128x128xf32> -> vector<128x128xf32>
    %c4_87 = arith.constant 4 : index
    %c0_88 = arith.constant 0 : index
    %c0_89 = arith.constant 0 : index
    %116 = vector.load %arg4[%c4_87, %c0_88, %c0_89] : memref<8x1x128xf32, #tpu.memory_space<vmem>>, vector<1x1x128xf32>
    %117 = vector.shape_cast %116 : vector<1x1x128xf32> to vector<1x128xf32>
    %118 = vector.broadcast %117 : vector<1x128xf32> to vector<128x128xf32>
    %119 = arith.addf %115, %118 : vector<128x128xf32>
    %cst_90 = arith.constant 0.000000e+00 : f32
    %120 = vector.broadcast %cst_90 : f32 to vector<128x128xf32>
    %121 = arith.maximumf %119, %120 : vector<128x128xf32>
    %122 = arith.truncf %121 : vector<128x128xf32> to vector<128x128xbf16>
    %c4_91 = arith.constant 4 : index
    %c0_92 = arith.constant 0 : index
    %c0_93 = arith.constant 0 : index
    %123 = vector.load %arg3[%c4_91, %c0_92, %c0_93] : memref<7x128x128xbf16, #tpu.memory_space<vmem>>, vector<1x128x128xbf16>
    %124 = vector.shape_cast %123 : vector<1x128x128xbf16> to vector<128x128xbf16>
    %cst_94 = arith.constant dense<0.000000e+00> : vector<128x128xf32>
    %125 = tpu.matmul %122, %124, %cst_94 {dimension_numbers = #tpu.dot_dimension_numbers<[1], [0], [0], [1], [0, 0, 1, 1], [], []>} : vector<128x128xbf16>, vector<128x128xbf16>, vector<128x128xf32> -> vector<128x128xf32>
    %c5_95 = arith.constant 5 : index
    %c0_96 = arith.constant 0 : index
    %c0_97 = arith.constant 0 : index
    %126 = vector.load %arg4[%c5_95, %c0_96, %c0_97] : memref<8x1x128xf32, #tpu.memory_space<vmem>>, vector<1x1x128xf32>
    %127 = vector.shape_cast %126 : vector<1x1x128xf32> to vector<1x128xf32>
    %128 = vector.broadcast %127 : vector<1x128xf32> to vector<128x128xf32>
    %129 = arith.addf %125, %128 : vector<128x128xf32>
    %cst_98 = arith.constant 0.000000e+00 : f32
    %130 = vector.broadcast %cst_98 : f32 to vector<128x128xf32>
    %131 = arith.maximumf %129, %130 : vector<128x128xf32>
    %132 = arith.truncf %131 : vector<128x128xf32> to vector<128x128xbf16>
    %c5_99 = arith.constant 5 : index
    %c0_100 = arith.constant 0 : index
    %c0_101 = arith.constant 0 : index
    %133 = vector.load %arg3[%c5_99, %c0_100, %c0_101] : memref<7x128x128xbf16, #tpu.memory_space<vmem>>, vector<1x128x128xbf16>
    %134 = vector.shape_cast %133 : vector<1x128x128xbf16> to vector<128x128xbf16>
    %cst_102 = arith.constant dense<0.000000e+00> : vector<128x128xf32>
    %135 = tpu.matmul %132, %134, %cst_102 {dimension_numbers = #tpu.dot_dimension_numbers<[1], [0], [0], [1], [0, 0, 1, 1], [], []>} : vector<128x128xbf16>, vector<128x128xbf16>, vector<128x128xf32> -> vector<128x128xf32>
    %c6_103 = arith.constant 6 : index
    %c0_104 = arith.constant 0 : index
    %c0_105 = arith.constant 0 : index
    %136 = vector.load %arg4[%c6_103, %c0_104, %c0_105] : memref<8x1x128xf32, #tpu.memory_space<vmem>>, vector<1x1x128xf32>
    %137 = vector.shape_cast %136 : vector<1x1x128xf32> to vector<1x128xf32>
    %138 = vector.broadcast %137 : vector<1x128xf32> to vector<128x128xf32>
    %139 = arith.addf %135, %138 : vector<128x128xf32>
    %cst_106 = arith.constant 0.000000e+00 : f32
    %140 = vector.broadcast %cst_106 : f32 to vector<128x128xf32>
    %141 = arith.maximumf %139, %140 : vector<128x128xf32>
    %142 = arith.truncf %141 : vector<128x128xf32> to vector<128x128xbf16>
    %c6_107 = arith.constant 6 : index
    %c0_108 = arith.constant 0 : index
    %c0_109 = arith.constant 0 : index
    %143 = vector.load %arg3[%c6_107, %c0_108, %c0_109] : memref<7x128x128xbf16, #tpu.memory_space<vmem>>, vector<1x128x128xbf16>
    %144 = vector.shape_cast %143 : vector<1x128x128xbf16> to vector<128x128xbf16>
    %cst_110 = arith.constant dense<0.000000e+00> : vector<128x128xf32>
    %145 = tpu.matmul %142, %144, %cst_110 {dimension_numbers = #tpu.dot_dimension_numbers<[1], [0], [0], [1], [0, 0, 1, 1], [], []>} : vector<128x128xbf16>, vector<128x128xbf16>, vector<128x128xf32> -> vector<128x128xf32>
    %c7_111 = arith.constant 7 : index
    %c0_112 = arith.constant 0 : index
    %c0_113 = arith.constant 0 : index
    %146 = vector.load %arg4[%c7_111, %c0_112, %c0_113] : memref<8x1x128xf32, #tpu.memory_space<vmem>>, vector<1x1x128xf32>
    %147 = vector.shape_cast %146 : vector<1x1x128xf32> to vector<1x128xf32>
    %148 = vector.broadcast %147 : vector<1x128xf32> to vector<128x128xf32>
    %149 = arith.addf %145, %148 : vector<128x128xf32>
    %150 = arith.addf %111, %149 : vector<128x128xf32>
    %c0_114 = arith.constant 0 : index
    %c0_115 = arith.constant 0 : index
    %151 = vector.load %arg5[%c0_114, %c0_115] : memref<256x128xf32, #tpu.memory_space<vmem>>, vector<128x128xf32>
    tpu.vector_store %arg5[%c0_114, %c0_115], %75 {strides = array<i32>} : memref<256x128xf32, #tpu.memory_space<vmem>>, vector<128x128xf32>,
    %c128_116 = arith.constant 128 : index
    %c0_117 = arith.constant 0 : index
    %152 = vector.load %arg5[%c128_116, %c0_117] : memref<256x128xf32, #tpu.memory_space<vmem>>, vector<128x128xf32>
    tpu.vector_store %arg5[%c128_116, %c0_117], %150 {strides = array<i32>} : memref<256x128xf32, #tpu.memory_space<vmem>>, vector<128x128xf32>,
    return
  }
  func.func @transform_0(%arg0: i32) -> (i32, i32) {
    %c0_i32 = arith.constant 0 : i32
    %c0_i32_0 = arith.constant 0 : i32
    return %arg0, %c0_i32 : i32, i32
  }
  func.func @transform_1(%arg0: i32) -> (i32, i32) {
    %c0_i32 = arith.constant 0 : i32
    %c0_i32_0 = arith.constant 0 : i32
    %c0_i32_1 = arith.constant 0 : i32
    return %c0_i32, %c0_i32_0 : i32, i32
  }
  func.func @transform_2(%arg0: i32) -> (i32, i32, i32) {
    %c0_i32 = arith.constant 0 : i32
    %c0_i32_0 = arith.constant 0 : i32
    %c0_i32_1 = arith.constant 0 : i32
    %c0_i32_2 = arith.constant 0 : i32
    return %c0_i32, %c0_i32_0, %c0_i32_1 : i32, i32, i32
  }
  func.func @transform_3(%arg0: i32) -> (i32, i32, i32) {
    %c0_i32 = arith.constant 0 : i32
    %c0_i32_0 = arith.constant 0 : i32
    %c0_i32_1 = arith.constant 0 : i32
    %c0_i32_2 = arith.constant 0 : i32
    return %c0_i32, %c0_i32_0, %c0_i32_1 : i32, i32, i32
  }
  func.func @transform_4(%arg0: i32) -> (i32, i32) {
    %c0_i32 = arith.constant 0 : i32
    %c0_i32_0 = arith.constant 0 : i32
    return %arg0, %c0_i32 : i32, i32
  }
}

</mosaic_0001>

<llo_original>
// kernel: tpu_custom_call.1
$region0: #{tpu_custom_call.1}
  #allocation0 [shape = 'u32[]', space=smem, size = 0x4, offset = 0x4, fixed_abs, tag = 'smem constant byte address 0x4 - core index']
  #allocation1 [shape = 'u32[144,128]{1,0:T(1,128)}', space=vmem, size = 0x12000, scoped, tag = 'internal scratch']
  %s0 = inlined_call_operand.vmem [shape: bf16[256,16], index: 0, kind: input, shape index: {}]
  %s1 = inlined_call_operand.vmem [shape: bf16[16,128], index: 1, kind: input, shape index: {}]
  %s2 = inlined_call_operand.hbm [shape: bf16[7,128,128], index: 2, kind: input, shape index: {}]
  %s3 = inlined_call_operand.vmem [shape: f32[8,1,128], index: 3, kind: input, shape index: {}]
  %s4 = inlined_call_operand.hbm [shape: f32[256,128], index: 4, kind: output, shape index: {}]
  %s5 = sld [smem:[#allocation0]]
  $region30: #{tpu_custom_call.1} parent=0
    _
  %s7 = ssub.s32 1, %s5
  %s8 = scalar_select 0, %s7, %s5
  $region1: #{tpu_custom_call.1} parent=0
    #allocation2 [shape = 'u8[229376]{0}', space=vmem, size = 0x38000, scoped, tag = 'input window, operand 2, single buffered']
    #allocation3 [shape = 's32[1]{0}', space=sflag, size = 0x4, scoped, tag = 'scoped memory for tpu_custom_call.1']
    #allocation4 [shape = 's32[1]{0}', space=sflag, size = 0x4, scoped, tag = 'scoped memory for tpu_custom_call.1']
    #allocation5 [shape = 'u8[131072]{0}', space=vmem, size = 0x20000, scoped, tag = 'output window, operand 0, single buffered']
    %9 = vsyncpa [#allocation3], 0
    %10 = vsyncpa [#allocation4], 0
    // Predicated region
    $region2: #{tpu_custom_call.1} parent=1 // pred_check
      _
    $region3: #{tpu_custom_call.1} parent=1 // pred_check_branch
      %12 = sbr.rel (0) target = $region5
    $region4: #{tpu_custom_call.1} parent=1 // pred_region
      _
    $region5: #{tpu_custom_call.1} parent=1 // pred_fallthru
      _
    // Predicated region
    $region6: #{tpu_custom_call.1} parent=1 // pred_check
      _
    $region7: #{tpu_custom_call.1} parent=1 // pred_check_branch
      %14 = sbr.rel (0) target = $region9
    $region8: #{tpu_custom_call.1} parent=1 // pred_region
      _
    $region9: #{tpu_custom_call.1} parent=1 // pred_fallthru
      _
    // Predicated region
    $region10: #{tpu_custom_call.1} parent=1 // pred_check
      _
    $region11: #{tpu_custom_call.1} parent=1 // pred_check_branch
      %16 = sbr.rel (0) target = $region13
    $region12: #{tpu_custom_call.1} parent=1 // pred_region
      %s18 = ssub.s32 7168, 7168
      %19 = vsyncadd [#allocation3], %s18
      %s20 = sshll.u32 [#allocation2], 4
      %s21 = int_to_ptr.vmem [resolvable:$true] %s20
      %26 = dma.hbm_to_vmem [thread:$0]  %s2, 7168, %s21, [#allocation3], 64, 64, 4
    $region13: #{tpu_custom_call.1} parent=1 // pred_fallthru
      _
    // Predicated region
    $region14: #{tpu_custom_call.1} parent=1 // pred_check
      _
    $region15: #{tpu_custom_call.1} parent=1 // pred_check_branch
      %28 = sbr.rel (0) target = $region17
    $region16: #{tpu_custom_call.1} parent=1 // pred_region
      _
    $region17: #{tpu_custom_call.1} parent=1 // pred_fallthru
      _
    // Predicated region
    $region18: #{tpu_custom_call.1} parent=1 // pred_check
      _
    $region19: #{tpu_custom_call.1} parent=1 // pred_check_branch
      %30 = sbr.rel (0) target = $region21
    $region20: #{tpu_custom_call.1} parent=1 // pred_region
      %31 = dma.done [#allocation3], 7168
    $region21: #{tpu_custom_call.1} parent=1 // pred_fallthru
      _
    %v33 = vld [vmem:[%s1] sm:$0xf]
    %v34 = vld [vmem:[%s1 + $0x4] sm:$0xf]
    %v35 = vld [vmem:[%s0] sm:$0xf]
    %v36 = vld [vmem:[%s0 + $0x4] sm:$0xf]
    %v37 = vld [vmem:[%s0 + $0x8] sm:$0xf]
    %v38 = vld [vmem:[%s0 + $0xc] sm:$0xf]
    %v39 = vld [vmem:[%s0 + $0x10] sm:$0xf]
    %v40 = vld [vmem:[%s0 + $0x14] sm:$0xf]
    %v41 = vld [vmem:[%s0 + $0x18] sm:$0xf]
    %v42 = vld [vmem:[%s0 + $0x1c] sm:$0xf]
    %v43 = vld [vmem:[%s0 + $0x20] sm:$0xf]
    %v44 = vld [vmem:[%s0 + $0x24] sm:$0xf]
    %v45 = vld [vmem:[%s0 + $0x28] sm:$0xf]
    %v46 = vld [vmem:[%s0 + $0x2c] sm:$0xf]
    %v47 = vld [vmem:[%s0 + $0x30] sm:$0xf]
    %v48 = vld [vmem:[%s0 + $0x34] sm:$0xf]
    %v49 = vld [vmem:[%s0 + $0x38] sm:$0xf]
    %v50 = vld [vmem:[%s0 + $0x3c] sm:$0xf]
    %v51 = vld [vmem:[%s3] sm:$0x1]
    %v53 = vlaneseq
    %v54 = vshrl.u32 %v53, 7
    %v55 = vsub.s32 0, %v54
    %v56 = vrot.slane %v51, %v55
    %v74 = vunpack.c.l.b16 %v35
    %v75 = vunpack.c.l.b16 %v36
    %v76 = vunpack.c.l.b16 %v37
    %v77 = vunpack.c.l.b16 %v38
    %v78 = vunpack.c.l.b16 %v39
    %v79 = vunpack.c.l.b16 %v40
    %v80 = vunpack.c.l.b16 %v41
    %v81 = vunpack.c.l.b16 %v42
    %v82 = vunpack.c.l.b16 %v43
    %v83 = vunpack.c.l.b16 %v44
    %v84 = vunpack.c.l.b16 %v45
    %v85 = vunpack.c.l.b16 %v46
    %v86 = vunpack.c.l.b16 %v47
    %v87 = vunpack.c.l.b16 %v48
    %v88 = vunpack.c.l.b16 %v49
    %v89 = vunpack.c.l.b16 %v50
    %v90 = vpack.c.b16 %v75, %v74
    %v91 = vpack.c.b16 %v77, %v76
    %v92 = vpack.c.b16 %v79, %v78
    %v93 = vpack.c.b16 %v81, %v80
    %v94 = vpack.c.b16 %v83, %v82
    %v95 = vpack.c.b16 %v85, %v84
    %v96 = vpack.c.b16 %v87, %v86
    %v97 = vpack.c.b16 %v89, %v88
    %v100 = vunpack.c.l.b16 %v33
    %v101 = vunpack.c.l.b16 %v34
    %v102 = vpack.c.b16 %v101, %v100
    %vm104 = vcmask 130048
    %v106 = vsel %vm104, %v90, 0
    %v109 = vsel %vm104, %v91, 0
    %v112 = vsel %vm104, %v92, 0
    %v115 = vsel %vm104, %v93, 0
    %v118 = vsel %vm104, %v94, 0
    %v121 = vsel %vm104, %v95, 0
    %v124 = vsel %vm104, %v96, 0
    %v127 = vsel %vm104, %v97, 0
    %129 = vmatprep.subr.bf16.mxu0 0
    %130 = vmatpush1.bf16.msra.mxu0 %v102
    %131 = vmatprep.subr.bf16.mxu0 0
    %132 = vmatpush1.bf16.msra.mxu0 0
    %133 = vmatprep.subr.bf16.mxu0 0
    %134 = vmatpush1.bf16.msra.mxu0 0
    %135 = vmatprep.subr.bf16.mxu0 0
    %136 = vmatpush1.bf16.msra.mxu0 0
    %137 = vmatprep.subr.bf16.mxu0 0
    %138 = vmatpush1.bf16.msra.mxu0 0
    %139 = vmatprep.subr.bf16.mxu0 0
    %140 = vmatpush1.bf16.msra.mxu0 0
    %141 = vmatprep.subr.bf16.mxu0 0
    %142 = vmatpush1.bf16.msra.mxu0 0
    %143 = vmatprep.subr.bf16.mxu0 0
    %144 = vmatpush1.bf16.msra.mxu0 0
    %145 = vmatprep.subr.bf16.mxu0 0
    %146 = vmatpush1.bf16.msra.mxu0 0
    %147 = vmatprep.subr.bf16.mxu0 0
    %148 = vmatpush1.bf16.msra.mxu0 0
    %149 = vmatprep.subr.bf16.mxu0 0
    %150 = vmatpush1.bf16.msra.mxu0 0
    %151 = vmatprep.subr.bf16.mxu0 0
    %152 = vmatpush1.bf16.msra.mxu0 0
    %153 = vmatprep.subr.bf16.mxu0 0
    %154 = vmatpush1.bf16.msra.mxu0 0
    %155 = vmatprep.subr.bf16.mxu0 0
    %156 = vmatpush1.bf16.msra.mxu0 0
    %157 = vmatprep.subr.bf16.mxu0 0
    %158 = vmatpush1.bf16.msra.mxu0 0
    %159 = vmatprep.subr.bf16.mxu0 0
    %160 = vmatpush1.bf16.msra.mxu0 0
    %161 = vmatprep.mubr.bf16.mxu0 0
    %162 = vmatmul.mubr.bf16.gmra.mrb[0].mxu0 %v106
    %v163 = vpop.f32.mrb[0].mxu0
    %v164 = vadd.f32 %v56, %v163
    %v165 = vpop.f32.mrb[0].mxu0
    %v166 = vpop.f32.mrb[0].mxu0
    %v167 = vadd.f32 %v56, %v166
    %v168 = vpop.f32.mrb[0].mxu0
    %169 = vmatprep.mubr.bf16.mxu0 0
    %170 = vmatmul.mubr.bf16.gmra.mrb[0].mxu0 %v109
    %v171 = vpop.f32.mrb[0].mxu0
    %v172 = vadd.f32 %v56, %v171
    %v173 = vpop.f32.mrb[0].mxu0
    %v174 = vpop.f32.mrb[0].mxu0
    %v175 = vadd.f32 %v56, %v174
    %v176 = vpop.f32.mrb[0].mxu0
    %177 = vmatprep.mubr.bf16.mxu0 0
    %178 = vmatmul.mubr.bf16.gmra.mrb[0].mxu0 %v112
    %v179 = vpop.f32.mrb[0].mxu0
    %v180 = vadd.f32 %v56, %v179
    %v181 = vpop.f32.mrb[0].mxu0
    %v182 = vpop.f32.mrb[0].mxu0
    %v183 = vadd.f32 %v56, %v182
    %v184 = vpop.f32.mrb[0].mxu0
    %185 = vmatprep.mubr.bf16.mxu0 0
    %186 = vmatmul.mubr.bf16.gmra.mrb[0].mxu0 %v115
    %v187 = vpop.f32.mrb[0].mxu0
    %v188 = vadd.f32 %v56, %v187
    %v189 = vpop.f32.mrb[0].mxu0
    %v190 = vpop.f32.mrb[0].mxu0
    %v191 = vadd.f32 %v56, %v190
    %v192 = vpop.f32.mrb[0].mxu0
    %193 = vmatprep.mubr.bf16.mxu0 0
    %194 = vmatmul.mubr.bf16.gmra.mrb[0].mxu0 %v118
    %v195 = vpop.f32.mrb[0].mxu0
    %v196 = vadd.f32 %v56, %v195
    %v197 = vpop.f32.mrb[0].mxu0
    %v198 = vpop.f32.mrb[0].mxu0
    %v199 = vadd.f32 %v56, %v198
    %v200 = vpop.f32.mrb[0].mxu0
    %201 = vmatprep.mubr.bf16.mxu0 0
    %202 = vmatmul.mubr.bf16.gmra.mrb[0].mxu0 %v121
    %v203 = vpop.f32.mrb[0].mxu0
    %v204 = vadd.f32 %v56, %v203
    %v205 = vpop.f32.mrb[0].mxu0
    %v206 = vpop.f32.mrb[0].mxu0
    %v207 = vadd.f32 %v56, %v206
    %v208 = vpop.f32.mrb[0].mxu0
    %209 = vmatprep.mubr.bf16.mxu0 0
    %210 = vmatmul.mubr.bf16.gmra.mrb[0].mxu0 %v124
    %v211 = vpop.f32.mrb[0].mxu0
    %v212 = vadd.f32 %v56, %v211
    %v213 = vpop.f32.mrb[0].mxu0
    %v214 = vpop.f32.mrb[0].mxu0
    %v215 = vadd.f32 %v56, %v214
    %v216 = vpop.f32.mrb[0].mxu0
    %217 = vmatprep.mubr.bf16.mxu0 0
    %218 = vmatmul.mubr.bf16.gmra.mrb[0].mxu0 %v127
    %v219 = vpop.f32.mrb[0].mxu0
    %v220 = vadd.f32 %v56, %v219
    %v221 = vpop.f32.mrb[0].mxu0
    %v222 = vpop.f32.mrb[0].mxu0
    %v223 = vadd.f32 %v56, %v222
    %v224 = vpop.f32.mrb[0].mxu0
    %225 = vdwg.mxu0
    %v226 = vmax.f32 %v164, 0.0
    %v227 = vmax.f32 %v167, 0.0
    %v228 = vmax.f32 %v172, 0.0
    %v229 = vmax.f32 %v175, 0.0
    %v230 = vmax.f32 %v180, 0.0
    %v231 = vmax.f32 %v183, 0.0
    %v232 = vmax.f32 %v188, 0.0
    %v233 = vmax.f32 %v191, 0.0
    %v234 = vmax.f32 %v196, 0.0
    %v235 = vmax.f32 %v199, 0.0
    %v236 = vmax.f32 %v204, 0.0
    %v237 = vmax.f32 %v207, 0.0
    %v238 = vmax.f32 %v212, 0.0
    %v239 = vmax.f32 %v215, 0.0
    %v240 = vmax.f32 %v220, 0.0
    %v241 = vmax.f32 %v223, 0.0
    %v242 = vpack.c.bf16 %v227, %v226
    %v243 = vpack.c.bf16 %v229, %v228
    %v244 = vpack.c.bf16 %v231, %v230
    %v245 = vpack.c.bf16 %v233, %v232
    %v246 = vpack.c.bf16 %v235, %v234
    %v247 = vpack.c.bf16 %v237, %v236
    %v248 = vpack.c.bf16 %v239, %v238
    %v249 = vpack.c.bf16 %v241, %v240
    %v250 = vld [vmem:[#allocation2] sm:$0xf]
    %v251 = vld [vmem:[#allocation2 + $0x4] sm:$0xf]
    %v252 = vld [vmem:[#allocation2 + $0x8] sm:$0xf]
    %v253 = vld [vmem:[#allocation2 + $0xc] sm:$0xf]
    %v254 = vld [vmem:[#allocation2 + $0x10] sm:$0xf]
    %v255 = vld [vmem:[#allocation2 + $0x14] sm:$0xf]
    %v256 = vld [vmem:[#allocation2 + $0x18] sm:$0xf]
    %v257 = vld [vmem:[#allocation2 + $0x1c] sm:$0xf]
    %v258 = vld [vmem:[#allocation2 + $0x20] sm:$0xf]
    %v259 = vld [vmem:[#allocation2 + $0x24] sm:$0xf]
    %v260 = vld [vmem:[#allocation2 + $0x28] sm:$0xf]
    %v261 = vld [vmem:[#allocation2 + $0x2c] sm:$0xf]
    %v262 = vld [vmem:[#allocation2 + $0x30] sm:$0xf]
    %v263 = vld [vmem:[#allocation2 + $0x34] sm:$0xf]
    %v264 = vld [vmem:[#allocation2 + $0x38] sm:$0xf]
    %v265 = vld [vmem:[#allocation2 + $0x3c] sm:$0xf]
    %s266 = scalar_lea.vmem %s3, 1
    %v267 = vld [vmem:[%s266] sm:$0x1]
    %v269 = vlaneseq
    %v270 = vshrl.u32 %v269, 7
    %v271 = vsub.s32 0, %v270
    %v272 = vrot.slane %v267, %v271
    %v290 = vunpack.c.l.b16 %v250
    %v291 = vunpack.c.l.b16 %v251
    %v292 = vunpack.c.l.b16 %v252
    %v293 = vunpack.c.l.b16 %v253
    %v294 = vunpack.c.l.b16 %v254
    %v295 = vunpack.c.l.b16 %v255
    %v296 = vunpack.c.l.b16 %v256
    %v297 = vunpack.c.l.b16 %v257
    %v298 = vunpack.c.l.b16 %v258
    %v299 = vunpack.c.l.b16 %v259
    %v300 = vunpack.c.l.b16 %v260
    %v301 = vunpack.c.l.b16 %v261
    %v302 = vunpack.c.l.b16 %v262
    %v303 = vunpack.c.l.b16 %v263
    %v304 = vunpack.c.l.b16 %v264
    %v305 = vunpack.c.l.b16 %v265
    %v306 = vpack.c.b16 %v291, %v290
    %v307 = vpack.c.b16 %v293, %v292
    %v308 = vpack.c.b16 %v295, %v294
    %v309 = vpack.c.b16 %v297, %v296
    %v310 = vpack.c.b16 %v299, %v298
    %v311 = vpack.c.b16 %v301, %v300
    %v312 = vpack.c.b16 %v303, %v302
    %v313 = vpack.c.b16 %v305, %v304
    %322 = vmatprep.subr.bf16.mxu0 0
    %323 = vmatpush1.bf16.msra.mxu0 %v306
    %324 = vmatprep.subr.bf16.mxu0 0
    %325 = vmatpush1.bf16.msra.mxu0 %v307
    %326 = vmatprep.subr.bf16.mxu0 0
    %327 = vmatpush1.bf16.msra.mxu0 %v308
    %328 = vmatprep.subr.bf16.mxu0 0
    %329 = vmatpush1.bf16.msra.mxu0 %v309
    %330 = vmatprep.subr.bf16.mxu0 0
    %331 = vmatpush1.bf16.msra.mxu0 %v310
    %332 = vmatprep.subr.bf16.mxu0 0
    %333 = vmatpush1.bf16.msra.mxu0 %v311
    %334 = vmatprep.subr.bf16.mxu0 0
    %335 = vmatpush1.bf16.msra.mxu0 %v312
    %336 = vmatprep.subr.bf16.mxu0 0
    %337 = vmatpush1.bf16.msra.mxu0 %v313
    %338 = vmatprep.subr.bf16.mxu0 0
    %339 = vmatpush1.bf16.msra.mxu0 0
    %340 = vmatprep.subr.bf16.mxu0 0
    %341 = vmatpush1.bf16.msra.mxu0 0
    %342 = vmatprep.subr.bf16.mxu0 0
    %343 = vmatpush1.bf16.msra.mxu0 0
    %344 = vmatprep.subr.bf16.mxu0 0
    %345 = vmatpush1.bf16.msra.mxu0 0
    %346 = vmatprep.subr.bf16.mxu0 0
    %347 = vmatpush1.bf16.msra.mxu0 0
    %348 = vmatprep.subr.bf16.mxu0 0
    %349 = vmatpush1.bf16.msra.mxu0 0
    %350 = vmatprep.subr.bf16.mxu0 0
    %351 = vmatpush1.bf16.msra.mxu0 0
    %352 = vmatprep.subr.bf16.mxu0 0
    %353 = vmatpush1.bf16.msra.mxu0 0
    %354 = vmatprep.mubr.bf16.mxu0 0
    %355 = vmatmul.mubr.bf16.gmra.mrb[0].mxu0 %v242
    %v356 = vpop.f32.mrb[0].mxu0
    %v357 = vadd.f32 %v272, %v356
    %v358 = vpop.f32.mrb[0].mxu0
    %v359 = vpop.f32.mrb[0].mxu0
    %v360 = vadd.f32 %v272, %v359
    %v361 = vpop.f32.mrb[0].mxu0
    %362 = vmatprep.mubr.bf16.mxu0 0
    %363 = vmatmul.mubr.bf16.gmra.mrb[0].mxu0 %v243
    %v364 = vpop.f32.mrb[0].mxu0
    %v365 = vadd.f32 %v272, %v364
    %v366 = vpop.f32.mrb[0].mxu0
    %v367 = vpop.f32.mrb[0].mxu0
    %v368 = vadd.f32 %v272, %v367
    %v369 = vpop.f32.mrb[0].mxu0
    %370 = vmatprep.mubr.bf16.mxu0 0
    %371 = vmatmul.mubr.bf16.gmra.mrb[0].mxu0 %v244
    %v372 = vpop.f32.mrb[0].mxu0
    %v373 = vadd.f32 %v272, %v372
    %v374 = vpop.f32.mrb[0].mxu0
    %v375 = vpop.f32.mrb[0].mxu0
    %v376 = vadd.f32 %v272, %v375
    %v377 = vpop.f32.mrb[0].mxu0
    %378 = vmatprep.mubr.bf16.mxu0 0
    %379 = vmatmul.mubr.bf16.gmra.mrb[0].mxu0 %v245
    %v380 = vpop.f32.mrb[0].mxu0
    %v381 = vadd.f32 %v272, %v380
    %v382 = vpop.f32.mrb[0].mxu0
    %v383 = vpop.f32.mrb[0].mxu0
    %v384 = vadd.f32 %v272, %v383
    %v385 = vpop.f32.mrb[0].mxu0
    %386 = vmatprep.mubr.bf16.mxu0 0
    %387 = vmatmul.mubr.bf16.gmra.mrb[0].mxu0 %v246
    %v388 = vpop.f32.mrb[0].mxu0
    %v389 = vadd.f32 %v272, %v388
    %v390 = vpop.f32.mrb[0].mxu0
    %v391 = vpop.f32.mrb[0].mxu0
    %v392 = vadd.f32 %v272, %v391
    %v393 = vpop.f32.mrb[0].mxu0
    %394 = vmatprep.mubr.bf16.mxu0 0
    %395 = vmatmul.mubr.bf16.gmra.mrb[0].mxu0 %v247
    %v396 = vpop.f32.mrb[0].mxu0
    %v397 = vadd.f32 %v272, %v396
    %v398 = vpop.f32.mrb[0].mxu0
    %v399 = vpop.f32.mrb[0].mxu0
    %v400 = vadd.f32 %v272, %v399
    %v401 = vpop.f32.mrb[0].mxu0
    %402 = vmatprep.mubr.bf16.mxu0 0
    %403 = vmatmul.mubr.bf16.gmra.mrb[0].mxu0 %v248
    %v404 = vpop.f32.mrb[0].mxu0
    %v405 = vadd.f32 %v272, %v404
    %v406 = vpop.f32.mrb[0].mxu0
    %v407 = vpop.f32.mrb[0].mxu0
    %v408 = vadd.f32 %v272, %v407
    %v409 = vpop.f32.mrb[0].mxu0
    %410 = vmatprep.mubr.bf16.mxu0 0
    %411 = vmatmul.mubr.bf16.gmra.mrb[0].mxu0 %v249
    %v412 = vpop.f32.mrb[0].mxu0
    %v413 = vadd.f32 %v272, %v412
    %v414 = vpop.f32.mrb[0].mxu0
    %v415 = vpop.f32.mrb[0].mxu0
    %v416 = vadd.f32 %v272, %v415
    %v417 = vpop.f32.mrb[0].mxu0
    %418 = vdwg.mxu0
    %v419 = vmax.f32 %v357, 0.0
    %v420 = vmax.f32 %v360, 0.0
    %v421 = vmax.f32 %v365, 0.0
    %v422 = vmax.f32 %v368, 0.0
    %v423 = vmax.f32 %v373, 0.0
    %v424 = vmax.f32 %v376, 0.0
    %v425 = vmax.f32 %v381, 0.0
    %v426 = vmax.f32 %v384, 0.0
    %v427 = vmax.f32 %v389, 0.0
    %v428 = vmax.f32 %v392, 0.0
    %v429 = vmax.f32 %v397, 0.0
    %v430 = vmax.f32 %v400, 0.0
    %v431 = vmax.f32 %v405, 0.0
    %v432 = vmax.f32 %v408, 0.0
    %v433 = vmax.f32 %v413, 0.0
    %v434 = vmax.f32 %v416, 0.0
    %v435 = vpack.c.bf16 %v420, %v419
    %v436 = vpack.c.bf16 %v422, %v421
    %v437 = vpack.c.bf16 %v424, %v423
    %v438 = vpack.c.bf16 %v426, %v425
    %v439 = vpack.c.bf16 %v428, %v427
    %v440 = vpack.c.bf16 %v430, %v429
    %v441 = vpack.c.bf16 %v432, %v431
    %v442 = vpack.c.bf16 %v434, %v433
    %s443 = scalar_lea.vmem [#allocation2], 64
    %v444 = vld [vmem:[%s443] sm:$0xf]
    %v445 = vld [vmem:[%s443 + $0x4] sm:$0xf]
    %v446 = vld [vmem:[%s443 + $0x8] sm:$0xf]
    %v447 = vld [vmem:[%s443 + $0xc] sm:$0xf]
    %v448 = vld [vmem:[%s443 + $0x10] sm:$0xf]
    %v449 = vld [vmem:[%s443 + $0x14] sm:$0xf]
    %v450 = vld [vmem:[%s443 + $0x18] sm:$0xf]
    %v451 = vld [vmem:[%s443 + $0x1c] sm:$0xf]
    %v452 = vld [vmem:[%s443 + $0x20] sm:$0xf]
    %v453 = vld [vmem:[%s443 + $0x24] sm:$0xf]
    %v454 = vld [vmem:[%s443 + $0x28] sm:$0xf]
    %v455 = vld [vmem:[%s443 + $0x2c] sm:$0xf]
    %v456 = vld [vmem:[%s443 + $0x30] sm:$0xf]
    %v457 = vld [vmem:[%s443 + $0x34] sm:$0xf]
    %v458 = vld [vmem:[%s443 + $0x38] sm:$0xf]
    %v459 = vld [vmem:[%s443 + $0x3c] sm:$0xf]
    %s460 = scalar_lea.vmem %s3, 2
    %v461 = vld [vmem:[%s460] sm:$0x1]
    %v463 = vlaneseq
    %v464 = vshrl.u32 %v463, 7
    %v465 = vsub.s32 0, %v464
    %v466 = vrot.slane %v461, %v465
    %v484 = vunpack.c.l.b16 %v444
    %v485 = vunpack.c.l.b16 %v445
    %v486 = vunpack.c.l.b16 %v446
    %v487 = vunpack.c.l.b16 %v447
    %v488 = vunpack.c.l.b16 %v448
    %v489 = vunpack.c.l.b16 %v449
    %v490 = vunpack.c.l.b16 %v450
    %v491 = vunpack.c.l.b16 %v451
    %v492 = vunpack.c.l.b16 %v452
    %v493 = vunpack.c.l.b16 %v453
    %v494 = vunpack.c.l.b16 %v454
    %v495 = vunpack.c.l.b16 %v455
    %v496 = vunpack.c.l.b16 %v456
    %v497 = vunpack.c.l.b16 %v457
    %v498 = vunpack.c.l.b16 %v458
    %v499 = vunpack.c.l.b16 %v459
    %v500 = vpack.c.b16 %v485, %v484
    %v501 = vpack.c.b16 %v487, %v486
    %v502 = vpack.c.b16 %v489, %v488
    %v503 = vpack.c.b16 %v491, %v490
    %v504 = vpack.c.b16 %v493, %v492
    %v505 = vpack.c.b16 %v495, %v494
    %v506 = vpack.c.b16 %v497, %v496
    %v507 = vpack.c.b16 %v499, %v498
    %516 = vmatprep.subr.bf16.mxu0 0
    %517 = vmatpush1.bf16.msra.mxu0 %v500
    %518 = vmatprep.subr.bf16.mxu0 0
    %519 = vmatpush1.bf16.msra.mxu0 %v501
    %520 = vmatprep.subr.bf16.mxu0 0
    %521 = vmatpush1.bf16.msra.mxu0 %v502
    %522 = vmatprep.subr.bf16.mxu0 0
    %523 = vmatpush1.bf16.msra.mxu0 %v503
    %524 = vmatprep.subr.bf16.mxu0 0
    %525 = vmatpush1.bf16.msra.mxu0 %v504
    %526 = vmatprep.subr.bf16.mxu0 0
    %527 = vmatpush1.bf16.msra.mxu0 %v505
    %528 = vmatprep.subr.bf16.mxu0 0
    %529 = vmatpush1.bf16.msra.mxu0 %v506
    %530 = vmatprep.subr.bf16.mxu0 0
    %531 = vmatpush1.bf16.msra.mxu0 %v507
    %532 = vmatprep.subr.bf16.mxu0 0
    %533 = vmatpush1.bf16.msra.mxu0 0
    %534 = vmatprep.subr.bf16.mxu0 0
    %535 = vmatpush1.bf16.msra.mxu0 0
    %536 = vmatprep.subr.bf16.mxu0 0
    %537 = vmatpush1.bf16.msra.mxu0 0
    %538 = vmatprep.subr.bf16.mxu0 0
    %539 = vmatpush1.bf16.msra.mxu0 0
    %540 = vmatprep.subr.bf16.mxu0 0
    %541 = vmatpush1.bf16.msra.mxu0 0
    %542 = vmatprep.subr.bf16.mxu0 0
    %543 = vmatpush1.bf16.msra.mxu0 0
    %544 = vmatprep.subr.bf16.mxu0 0
    %545 = vmatpush1.bf16.msra.mxu0 0
    %546 = vmatprep.subr.bf16.mxu0 0
    %547 = vmatpush1.bf16.msra.mxu0 0
    %548 = vmatprep.mubr.bf16.mxu0 0
    %549 = vmatmul.mubr.bf16.gmra.mrb[0].mxu0 %v435
    %v550 = vpop.f32.mrb[0].mxu0
    %v551 = vadd.f32 %v466, %v550
    %v552 = vpop.f32.mrb[0].mxu0
    %v553 = vpop.f32.mrb[0].mxu0
    %v554 = vadd.f32 %v466, %v553
    %v555 = vpop.f32.mrb[0].mxu0
    %556 = vmatprep.mubr.bf16.mxu0 0
    %557 = vmatmul.mubr.bf16.gmra.mrb[0].mxu0 %v436
    %v558 = vpop.f32.mrb[0].mxu0
    %v559 = vadd.f32 %v466, %v558
    %v560 = vpop.f32.mrb[0].mxu0
    %v561 = vpop.f32.mrb[0].mxu0
    %v562 = vadd.f32 %v466, %v561
    %v563 = vpop.f32.mrb[0].mxu0
    %564 = vmatprep.mubr.bf16.mxu0 0
    %565 = vmatmul.mubr.bf16.gmra.mrb[0].mxu0 %v437
    %v566 = vpop.f32.mrb[0].mxu0
    %v567 = vadd.f32 %v466, %v566
    %v568 = vpop.f32.mrb[0].mxu0
    %v569 = vpop.f32.mrb[0].mxu0
    %v570 = vadd.f32 %v466, %v569
    %v571 = vpop.f32.mrb[0].mxu0
    %572 = vmatprep.mubr.bf16.mxu0 0
    %573 = vmatmul.mubr.bf16.gmra.mrb[0].mxu0 %v438
    %v574 = vpop.f32.mrb[0].mxu0
    %v575 = vadd.f32 %v466, %v574
    %v576 = vpop.f32.mrb[0].mxu0
    %v577 = vpop.f32.mrb[0].mxu0
    %v578 = vadd.f32 %v466, %v577
    %v579 = vpop.f32.mrb[0].mxu0
    %580 = vmatprep.mubr.bf16.mxu0 0
    %581 = vmatmul.mubr.bf16.gmra.mrb[0].mxu0 %v439
    %v582 = vpop.f32.mrb[0].mxu0
    %v583 = vadd.f32 %v466, %v582
    %v584 = vpop.f32.mrb[0].mxu0
    %v585 = vpop.f32.mrb[0].mxu0
    %v586 = vadd.f32 %v466, %v585
    %v587 = vpop.f32.mrb[0].mxu0
    %588 = vmatprep.mubr.bf16.mxu0 0
    %589 = vmatmul.mubr.bf16.gmra.mrb[0].mxu0 %v440
    %v590 = vpop.f32.mrb[0].mxu0
    %v591 = vadd.f32 %v466, %v590
    %v592 = vpop.f32.mrb[0].mxu0
    %v593 = vpop.f32.mrb[0].mxu0
    %v594 = vadd.f32 %v466, %v593
    %v595 = vpop.f32.mrb[0].mxu0
    %596 = vmatprep.mubr.bf16.mxu0 0
    %597 = vmatmul.mubr.bf16.gmra.mrb[0].mxu0 %v441
    %v598 = vpop.f32.mrb[0].mxu0
    %v599 = vadd.f32 %v466, %v598
    %v600 = vpop.f32.mrb[0].mxu0
    %v601 = vpop.f32.mrb[0].mxu0
    %v602 = vadd.f32 %v466, %v601
    %v603 = vpop.f32.mrb[0].mxu0
    %604 = vmatprep.mubr.bf16.mxu0 0
    %605 = vmatmul.mubr.bf16.gmra.mrb[0].mxu0 %v442
    %v606 = vpop.f32.mrb[0].mxu0
    %v607 = vadd.f32 %v466, %v606
    %v608 = vpop.f32.mrb[0].mxu0
    %v609 = vpop.f32.mrb[0].mxu0
    %v610 = vadd.f32 %v466, %v609
    %v611 = vpop.f32.mrb[0].mxu0
    %612 = vdwg.mxu0
    %v613 = vmax.f32 %v551, 0.0
    %v614 = vmax.f32 %v554, 0.0
    %v615 = vmax.f32 %v559, 0.0
    %v616 = vmax.f32 %v562, 0.0
    %v617 = vmax.f32 %v567, 0.0
    %v618 = vmax.f32 %v570, 0.0
    %v619 = vmax.f32 %v575, 0.0
    %v620 = vmax.f32 %v578, 0.0
    %v621 = vmax.f32 %v583, 0.0
    %v622 = vmax.f32 %v586, 0.0
    %v623 = vmax.f32 %v591, 0.0
    %v624 = vmax.f32 %v594, 0.0
    %v625 = vmax.f32 %v599, 0.0
    %v626 = vmax.f32 %v602, 0.0
    %v627 = vmax.f32 %v607, 0.0
    %v628 = vmax.f32 %v610, 0.0
    %v629 = vpack.c.bf16 %v614, %v613
    %v630 = vpack.c.bf16 %v616, %v615
    %v631 = vpack.c.bf16 %v618, %v617
    %v632 = vpack.c.bf16 %v620, %v619
    %v633 = vpack.c.bf16 %v622, %v621
    %v634 = vpack.c.bf16 %v624, %v623
    %v635 = vpack.c.bf16 %v626, %v625
    %v636 = vpack.c.bf16 %v628, %v627
    %s637 = scalar_lea.vmem [#allocation2], 128
    %v638 = vld [vmem:[%s637] sm:$0xf]
    %v639 = vld [vmem:[%s637 + $0x4] sm:$0xf]
    %v640 = vld [vmem:[%s637 + $0x8] sm:$0xf]
    %v641 = vld [vmem:[%s637 + $0xc] sm:$0xf]
    %v642 = vld [vmem:[%s637 + $0x10] sm:$0xf]
    %v643 = vld [vmem:[%s637 + $0x14] sm:$0xf]
    %v644 = vld [vmem:[%s637 + $0x18] sm:$0xf]
    %v645 = vld [vmem:[%s637 + $0x1c] sm:$0xf]
    %v646 = vld [vmem:[%s637 + $0x20] sm:$0xf]
    %v647 = vld [vmem:[%s637 + $0x24] sm:$0xf]
    %v648 = vld [vmem:[%s637 + $0x28] sm:$0xf]
    %v649 = vld [vmem:[%s637 + $0x2c] sm:$0xf]
    %v650 = vld [vmem:[%s637 + $0x30] sm:$0xf]
    %v651 = vld [vmem:[%s637 + $0x34] sm:$0xf]
    %v652 = vld [vmem:[%s637 + $0x38] sm:$0xf]
    %v653 = vld [vmem:[%s637 + $0x3c] sm:$0xf]
    %s654 = scalar_lea.vmem %s3, 3
    %v655 = vld [vmem:[%s654] sm:$0x1]
    %v657 = vlaneseq
    %v658 = vshrl.u32 %v657, 7
    %v659 = vsub.s32 0, %v658
    %v660 = vrot.slane %v655, %v659
    %v678 = vunpack.c.l.b16 %v638
    %v679 = vunpack.c.l.b16 %v639
    %v680 = vunpack.c.l.b16 %v640
    %v681 = vunpack.c.l.b16 %v641
    %v682 = vunpack.c.l.b16 %v642
    %v683 = vunpack.c.l.b16 %v643
    %v684 = vunpack.c.l.b16 %v644
    %v685 = vunpack.c.l.b16 %v645
    %v686 = vunpack.c.l.b16 %v646
    %v687 = vunpack.c.l.b16 %v647
    %v688 = vunpack.c.l.b16 %v648
    %v689 = vunpack.c.l.b16 %v649
    %v690 = vunpack.c.l.b16 %v650
    %v691 = vunpack.c.l.b16 %v651
    %v692 = vunpack.c.l.b16 %v652
    %v693 = vunpack.c.l.b16 %v653
    %v694 = vpack.c.b16 %v679, %v678
    %v695 = vpack.c.b16 %v681, %v680
    %v696 = vpack.c.b16 %v683, %v682
    %v697 = vpack.c.b16 %v685, %v684
    %v698 = vpack.c.b16 %v687, %v686
    %v699 = vpack.c.b16 %v689, %v688
    %v700 = vpack.c.b16 %v691, %v690
    %v701 = vpack.c.b16 %v693, %v692
    %710 = vmatprep.subr.bf16.mxu0 0
    %711 = vmatpush1.bf16.msra.mxu0 %v694
    %712 = vmatprep.subr.bf16.mxu0 0
    %713 = vmatpush1.bf16.msra.mxu0 %v695
    %714 = vmatprep.subr.bf16.mxu0 0
    %715 = vmatpush1.bf16.msra.mxu0 %v696
    %716 = vmatprep.subr.bf16.mxu0 0
    %717 = vmatpush1.bf16.msra.mxu0 %v697
    %718 = vmatprep.subr.bf16.mxu0 0
    %719 = vmatpush1.bf16.msra.mxu0 %v698
    %720 = vmatprep.subr.bf16.mxu0 0
    %721 = vmatpush1.bf16.msra.mxu0 %v699
    %722 = vmatprep.subr.bf16.mxu0 0
    %723 = vmatpush1.bf16.msra.mxu0 %v700
    %724 = vmatprep.subr.bf16.mxu0 0
    %725 = vmatpush1.bf16.msra.mxu0 %v701
    %726 = vmatprep.subr.bf16.mxu0 0
    %727 = vmatpush1.bf16.msra.mxu0 0
    %728 = vmatprep.subr.bf16.mxu0 0
    %729 = vmatpush1.bf16.msra.mxu0 0
    %730 = vmatprep.subr.bf16.mxu0 0
    %731 = vmatpush1.bf16.msra.mxu0 0
    %732 = vmatprep.subr.bf16.mxu0 0
    %733 = vmatpush1.bf16.msra.mxu0 0
    %734 = vmatprep.subr.bf16.mxu0 0
    %735 = vmatpush1.bf16.msra.mxu0 0
    %736 = vmatprep.subr.bf16.mxu0 0
    %737 = vmatpush1.bf16.msra.mxu0 0
    %738 = vmatprep.subr.bf16.mxu0 0
    %739 = vmatpush1.bf16.msra.mxu0 0
    %740 = vmatprep.subr.bf16.mxu0 0
    %741 = vmatpush1.bf16.msra.mxu0 0
    %742 = vmatprep.mubr.bf16.mxu0 0
    %743 = vmatmul.mubr.bf16.gmra.mrb[0].mxu0 %v629
    %v744 = vpop.f32.mrb[0].mxu0
    %v745 = vadd.f32 %v660, %v744
    %v746 = vpop.f32.mrb[0].mxu0
    %v747 = vpop.f32.mrb[0].mxu0
    %v748 = vadd.f32 %v660, %v747
    %v749 = vpop.f32.mrb[0].mxu0
    %750 = vmatprep.mubr.bf16.mxu0 0
    %751 = vmatmul.mubr.bf16.gmra.mrb[0].mxu0 %v630
    %v752 = vpop.f32.mrb[0].mxu0
    %v753 = vadd.f32 %v660, %v752
    %v754 = vpop.f32.mrb[0].mxu0
    %v755 = vpop.f32.mrb[0].mxu0
    %v756 = vadd.f32 %v660, %v755
    %v757 = vpop.f32.mrb[0].mxu0
    %758 = vmatprep.mubr.bf16.mxu0 0
    %759 = vmatmul.mubr.bf16.gmra.mrb[0].mxu0 %v631
    %v760 = vpop.f32.mrb[0].mxu0
    %v761 = vadd.f32 %v660, %v760
    %v762 = vpop.f32.mrb[0].mxu0
    %v763 = vpop.f32.mrb[0].mxu0
    %v764 = vadd.f32 %v660, %v763
    %v765 = vpop.f32.mrb[0].mxu0
    %766 = vmatprep.mubr.bf16.mxu0 0
    %767 = vmatmul.mubr.bf16.gmra.mrb[0].mxu0 %v632
    %v768 = vpop.f32.mrb[0].mxu0
    %v769 = vadd.f32 %v660, %v768
    %v770 = vpop.f32.mrb[0].mxu0
    %v771 = vpop.f32.mrb[0].mxu0
    %v772 = vadd.f32 %v660, %v771
    %v773 = vpop.f32.mrb[0].mxu0
    %774 = vmatprep.mubr.bf16.mxu0 0
    %775 = vmatmul.mubr.bf16.gmra.mrb[0].mxu0 %v633
    %v776 = vpop.f32.mrb[0].mxu0
    %v777 = vadd.f32 %v660, %v776
    %v778 = vpop.f32.mrb[0].mxu0
    %v779 = vpop.f32.mrb[0].mxu0
    %v780 = vadd.f32 %v660, %v779
    %v781 = vpop.f32.mrb[0].mxu0
    %782 = vmatprep.mubr.bf16.mxu0 0
    %783 = vmatmul.mubr.bf16.gmra.mrb[0].mxu0 %v634
    %v784 = vpop.f32.mrb[0].mxu0
    %v785 = vadd.f32 %v660, %v784
    %v786 = vpop.f32.mrb[0].mxu0
    %v787 = vpop.f32.mrb[0].mxu0
    %v788 = vadd.f32 %v660, %v787
    %v789 = vpop.f32.mrb[0].mxu0
    %790 = vmatprep.mubr.bf16.mxu0 0
    %791 = vmatmul.mubr.bf16.gmra.mrb[0].mxu0 %v635
    %v792 = vpop.f32.mrb[0].mxu0
    %v793 = vadd.f32 %v660, %v792
    %v794 = vpop.f32.mrb[0].mxu0
    %v795 = vpop.f32.mrb[0].mxu0
    %v796 = vadd.f32 %v660, %v795
    %v797 = vpop.f32.mrb[0].mxu0
    %798 = vmatprep.mubr.bf16.mxu0 0
    %799 = vmatmul.mubr.bf16.gmra.mrb[0].mxu0 %v636
    %v800 = vpop.f32.mrb[0].mxu0
    %v801 = vadd.f32 %v660, %v800
    %v802 = vpop.f32.mrb[0].mxu0
    %v803 = vpop.f32.mrb[0].mxu0
    %v804 = vadd.f32 %v660, %v803
    %v805 = vpop.f32.mrb[0].mxu0
    %806 = vdwg.mxu0
    %v807 = vpack.c.bf16 %v748, %v745
    %v808 = vpack.c.bf16 %v756, %v753
    %v809 = vpack.c.bf16 %v764, %v761
    %v810 = vpack.c.bf16 %v772, %v769
    %v811 = vpack.c.bf16 %v780, %v777
    %v812 = vpack.c.bf16 %v788, %v785
    %v813 = vpack.c.bf16 %v796, %v793
    %v814 = vpack.c.bf16 %v804, %v801
    %s815 = scalar_lea.vmem [#allocation2], 192
    %v816 = vld [vmem:[%s815] sm:$0xf]
    %v817 = vld [vmem:[%s815 + $0x4] sm:$0xf]
    %v818 = vld [vmem:[%s815 + $0x8] sm:$0xf]
    %v819 = vld [vmem:[%s815 + $0xc] sm:$0xf]
    %v820 = vld [vmem:[%s815 + $0x10] sm:$0xf]
    %v821 = vld [vmem:[%s815 + $0x14] sm:$0xf]
    %v822 = vld [vmem:[%s815 + $0x18] sm:$0xf]
    %v823 = vld [vmem:[%s815 + $0x1c] sm:$0xf]
    %v824 = vld [vmem:[%s815 + $0x20] sm:$0xf]
    %v825 = vld [vmem:[%s815 + $0x24] sm:$0xf]
    %v826 = vld [vmem:[%s815 + $0x28] sm:$0xf]
    %v827 = vld [vmem:[%s815 + $0x2c] sm:$0xf]
    %v828 = vld [vmem:[%s815 + $0x30] sm:$0xf]
    %v829 = vld [vmem:[%s815 + $0x34] sm:$0xf]
    %v830 = vld [vmem:[%s815 + $0x38] sm:$0xf]
    %v831 = vld [vmem:[%s815 + $0x3c] sm:$0xf]
    %s832 = scalar_lea.vmem %s3, 4
    %v833 = vld [vmem:[%s832] sm:$0x1]
    %v835 = vlaneseq
    %v836 = vshrl.u32 %v835, 7
    %v837 = vsub.s32 0, %v836
    %v838 = vrot.slane %v833, %v837
    %v856 = vunpack.c.l.b16 %v816
    %v857 = vunpack.c.l.b16 %v817
    %v858 = vunpack.c.l.b16 %v818
    %v859 = vunpack.c.l.b16 %v819
    %v860 = vunpack.c.l.b16 %v820
    %v861 = vunpack.c.l.b16 %v821
    %v862 = vunpack.c.l.b16 %v822
    %v863 = vunpack.c.l.b16 %v823
    %v864 = vunpack.c.l.b16 %v824
    %v865 = vunpack.c.l.b16 %v825
    %v866 = vunpack.c.l.b16 %v826
    %v867 = vunpack.c.l.b16 %v827
    %v868 = vunpack.c.l.b16 %v828
    %v869 = vunpack.c.l.b16 %v829
    %v870 = vunpack.c.l.b16 %v830
    %v871 = vunpack.c.l.b16 %v831
    %v872 = vpack.c.b16 %v857, %v856
    %v873 = vpack.c.b16 %v859, %v858
    %v874 = vpack.c.b16 %v861, %v860
    %v875 = vpack.c.b16 %v863, %v862
    %v876 = vpack.c.b16 %v865, %v864
    %v877 = vpack.c.b16 %v867, %v866
    %v878 = vpack.c.b16 %v869, %v868
    %v879 = vpack.c.b16 %v871, %v870
    %888 = vmatprep.subr.bf16.mxu0 0
    %889 = vmatpush1.bf16.msra.mxu0 %v872
    %890 = vmatprep.subr.bf16.mxu0 0
    %891 = vmatpush1.bf16.msra.mxu0 %v873
    %892 = vmatprep.subr.bf16.mxu0 0
    %893 = vmatpush1.bf16.msra.mxu0 %v874
    %894 = vmatprep.subr.bf16.mxu0 0
    %895 = vmatpush1.bf16.msra.mxu0 %v875
    %896 = vmatprep.subr.bf16.mxu0 0
    %897 = vmatpush1.bf16.msra.mxu0 %v876
    %898 = vmatprep.subr.bf16.mxu0 0
    %899 = vmatpush1.bf16.msra.mxu0 %v877
    %900 = vmatprep.subr.bf16.mxu0 0
    %901 = vmatpush1.bf16.msra.mxu0 %v878
    %902 = vmatprep.subr.bf16.mxu0 0
    %903 = vmatpush1.bf16.msra.mxu0 %v879
    %904 = vmatprep.subr.bf16.mxu0 0
    %905 = vmatpush1.bf16.msra.mxu0 0
    %906 = vmatprep.subr.bf16.mxu0 0
    %907 = vmatpush1.bf16.msra.mxu0 0
    %908 = vmatprep.subr.bf16.mxu0 0
    %909 = vmatpush1.bf16.msra.mxu0 0
    %910 = vmatprep.subr.bf16.mxu0 0
    %911 = vmatpush1.bf16.msra.mxu0 0
    %912 = vmatprep.subr.bf16.mxu0 0
    %913 = vmatpush1.bf16.msra.mxu0 0
    %914 = vmatprep.subr.bf16.mxu0 0
    %915 = vmatpush1.bf16.msra.mxu0 0
    %916 = vmatprep.subr.bf16.mxu0 0
    %917 = vmatpush1.bf16.msra.mxu0 0
    %918 = vmatprep.subr.bf16.mxu0 0
    %919 = vmatpush1.bf16.msra.mxu0 0
    %920 = vmatprep.mubr.bf16.mxu0 0
    %921 = vmatmul.mubr.bf16.gmra.mrb[0].mxu0 %v807
    %v922 = vpop.f32.mrb[0].mxu0
    %v923 = vadd.f32 %v838, %v922
    %v924 = vpop.f32.mrb[0].mxu0
    %v925 = vpop.f32.mrb[0].mxu0
    %v926 = vadd.f32 %v838, %v925
    %v927 = vpop.f32.mrb[0].mxu0
    %928 = vmatprep.mubr.bf16.mxu0 0
    %929 = vmatmul.mubr.bf16.gmra.mrb[0].mxu0 %v808
    %v930 = vpop.f32.mrb[0].mxu0
    %v931 = vadd.f32 %v838, %v930
    %v932 = vpop.f32.mrb[0].mxu0
    %v933 = vpop.f32.mrb[0].mxu0
    %v934 = vadd.f32 %v838, %v933
    %v935 = vpop.f32.mrb[0].mxu0
    %936 = vmatprep.mubr.bf16.mxu0 0
    %937 = vmatmul.mubr.bf16.gmra.mrb[0].mxu0 %v809
    %v938 = vpop.f32.mrb[0].mxu0
    %v939 = vadd.f32 %v838, %v938
    %v940 = vpop.f32.mrb[0].mxu0
    %v941 = vpop.f32.mrb[0].mxu0
    %v942 = vadd.f32 %v838, %v941
    %v943 = vpop.f32.mrb[0].mxu0
    %944 = vmatprep.mubr.bf16.mxu0 0
    %945 = vmatmul.mubr.bf16.gmra.mrb[0].mxu0 %v810
    %v946 = vpop.f32.mrb[0].mxu0
    %v947 = vadd.f32 %v838, %v946
    %v948 = vpop.f32.mrb[0].mxu0
    %v949 = vpop.f32.mrb[0].mxu0
    %v950 = vadd.f32 %v838, %v949
    %v951 = vpop.f32.mrb[0].mxu0
    %952 = vmatprep.mubr.bf16.mxu0 0
    %953 = vmatmul.mubr.bf16.gmra.mrb[0].mxu0 %v811
    %v954 = vpop.f32.mrb[0].mxu0
    %v955 = vadd.f32 %v838, %v954
    %v956 = vpop.f32.mrb[0].mxu0
    %v957 = vpop.f32.mrb[0].mxu0
    %v958 = vadd.f32 %v838, %v957
    %v959 = vpop.f32.mrb[0].mxu0
    %960 = vmatprep.mubr.bf16.mxu0 0
    %961 = vmatmul.mubr.bf16.gmra.mrb[0].mxu0 %v812
    %v962 = vpop.f32.mrb[0].mxu0
    %v963 = vadd.f32 %v838, %v962
    %v964 = vpop.f32.mrb[0].mxu0
    %v965 = vpop.f32.mrb[0].mxu0
    %v966 = vadd.f32 %v838, %v965
    %v967 = vpop.f32.mrb[0].mxu0
    %968 = vmatprep.mubr.bf16.mxu0 0
    %969 = vmatmul.mubr.bf16.gmra.mrb[0].mxu0 %v813
    %v970 = vpop.f32.mrb[0].mxu0
    %v971 = vadd.f32 %v838, %v970
    %v972 = vpop.f32.mrb[0].mxu0
    %v973 = vpop.f32.mrb[0].mxu0
    %v974 = vadd.f32 %v838, %v973
    %v975 = vpop.f32.mrb[0].mxu0
    %976 = vmatprep.mubr.bf16.mxu0 0
    %977 = vmatmul.mubr.bf16.gmra.mrb[0].mxu0 %v814
    %v978 = vpop.f32.mrb[0].mxu0
    %v979 = vadd.f32 %v838, %v978
    %v980 = vpop.f32.mrb[0].mxu0
    %v981 = vpop.f32.mrb[0].mxu0
    %v982 = vadd.f32 %v838, %v981
    %v983 = vpop.f32.mrb[0].mxu0
    %984 = vdwg.mxu0
    %v985 = vmax.f32 %v923, 0.0
    %v986 = vmax.f32 %v926, 0.0
    %v987 = vmax.f32 %v931, 0.0
    %v988 = vmax.f32 %v934, 0.0
    %v989 = vmax.f32 %v939, 0.0
    %v990 = vmax.f32 %v942, 0.0
    %v991 = vmax.f32 %v947, 0.0
    %v992 = vmax.f32 %v950, 0.0
    %v993 = vmax.f32 %v955, 0.0
    %v994 = vmax.f32 %v958, 0.0
    %v995 = vmax.f32 %v963, 0.0
    %v996 = vmax.f32 %v966, 0.0
    %v997 = vmax.f32 %v971, 0.0
    %v998 = vmax.f32 %v974, 0.0
    %v999 = vmax.f32 %v979, 0.0
    %v1000 = vmax.f32 %v982, 0.0
    %v1001 = vpack.c.bf16 %v986, %v985
    %v1002 = vpack.c.bf16 %v988, %v987
    %v1003 = vpack.c.bf16 %v990, %v989
    %v1004 = vpack.c.bf16 %v992, %v991
    %v1005 = vpack.c.bf16 %v994, %v993
    %v1006 = vpack.c.bf16 %v996, %v995
    %v1007 = vpack.c.bf16 %v998, %v997
    %v1008 = vpack.c.bf16 %v1000, %v999
    %s1009 = scalar_lea.vmem [#allocation2], 256
    %v1010 = vld [vmem:[%s1009] sm:$0xf]
    %v1011 = vld [vmem:[%s1009 + $0x4] sm:$0xf]
    %v1012 = vld [vmem:[%s1009 + $0x8] sm:$0xf]
    %v1013 = vld [vmem:[%s1009 + $0xc] sm:$0xf]
    %v1014 = vld [vmem:[%s1009 + $0x10] sm:$0xf]
    %v1015 = vld [vmem:[%s1009 + $0x14] sm:$0xf]
    %v1016 = vld [vmem:[%s1009 + $0x18] sm:$0xf]
    %v1017 = vld [vmem:[%s1009 + $0x1c] sm:$0xf]
    %v1018 = vld [vmem:[%s1009 + $0x20] sm:$0xf]
    %v1019 = vld [vmem:[%s1009 + $0x24] sm:$0xf]
    %v1020 = vld [vmem:[%s1009 + $0x28] sm:$0xf]
    %v1021 = vld [vmem:[%s1009 + $0x2c] sm:$0xf]
    %v1022 = vld [vmem:[%s1009 + $0x30] sm:$0xf]
    %v1023 = vld [vmem:[%s1009 + $0x34] sm:$0xf]
    %v1024 = vld [vmem:[%s1009 + $0x38] sm:$0xf]
    %v1025 = vld [vmem:[%s1009 + $0x3c] sm:$0xf]
    %s1026 = scalar_lea.vmem %s3, 5
    %v1027 = vld [vmem:[%s1026] sm:$0x1]
    %v1029 = vlaneseq
    %v1030 = vshrl.u32 %v1029, 7
    %v1031 = vsub.s32 0, %v1030
    %v1032 = vrot.slane %v1027, %v1031
    %v1050 = vunpack.c.l.b16 %v1010
    %v1051 = vunpack.c.l.b16 %v1011
    %v1052 = vunpack.c.l.b16 %v1012
    %v1053 = vunpack.c.l.b16 %v1013
    %v1054 = vunpack.c.l.b16 %v1014
    %v1055 = vunpack.c.l.b16 %v1015
    %v1056 = vunpack.c.l.b16 %v1016
    %v1057 = vunpack.c.l.b16 %v1017
    %v1058 = vunpack.c.l.b16 %v1018
    %v1059 = vunpack.c.l.b16 %v1019
    %v1060 = vunpack.c.l.b16 %v1020
    %v1061 = vunpack.c.l.b16 %v1021
    %v1062 = vunpack.c.l.b16 %v1022
    %v1063 = vunpack.c.l.b16 %v1023
    %v1064 = vunpack.c.l.b16 %v1024
    %v1065 = vunpack.c.l.b16 %v1025
    %v1066 = vpack.c.b16 %v1051, %v1050
    %v1067 = vpack.c.b16 %v1053, %v1052
    %v1068 = vpack.c.b16 %v1055, %v1054
    %v1069 = vpack.c.b16 %v1057, %v1056
    %v1070 = vpack.c.b16 %v1059, %v1058
    %v1071 = vpack.c.b16 %v1061, %v1060
    %v1072 = vpack.c.b16 %v1063, %v1062
    %v1073 = vpack.c.b16 %v1065, %v1064
    %1082 = vmatprep.subr.bf16.mxu0 0
    %1083 = vmatpush1.bf16.msra.mxu0 %v1066
    %1084 = vmatprep.subr.bf16.mxu0 0
    %1085 = vmatpush1.bf16.msra.mxu0 %v1067
    %1086 = vmatprep.subr.bf16.mxu0 0
    %1087 = vmatpush1.bf16.msra.mxu0 %v1068
    %1088 = vmatprep.subr.bf16.mxu0 0
    %1089 = vmatpush1.bf16.msra.mxu0 %v1069
    %1090 = vmatprep.subr.bf16.mxu0 0
    %1091 = vmatpush1.bf16.msra.mxu0 %v1070
    %1092 = vmatprep.subr.bf16.mxu0 0
    %1093 = vmatpush1.bf16.msra.mxu0 %v1071
    %1094 = vmatprep.subr.bf16.mxu0 0
    %1095 = vmatpush1.bf16.msra.mxu0 %v1072
    %1096 = vmatprep.subr.bf16.mxu0 0
    %1097 = vmatpush1.bf16.msra.mxu0 %v1073
    %1098 = vmatprep.subr.bf16.mxu0 0
    %1099 = vmatpush1.bf16.msra.mxu0 0
    %1100 = vmatprep.subr.bf16.mxu0 0
    %1101 = vmatpush1.bf16.msra.mxu0 0
    %1102 = vmatprep.subr.bf16.mxu0 0
    %1103 = vmatpush1.bf16.msra.mxu0 0
    %1104 = vmatprep.subr.bf16.mxu0 0
    %1105 = vmatpush1.bf16.msra.mxu0 0
    %1106 = vmatprep.subr.bf16.mxu0 0
    %1107 = vmatpush1.bf16.msra.mxu0 0
    %1108 = vmatprep.subr.bf16.mxu0 0
    %1109 = vmatpush1.bf16.msra.mxu0 0
    %1110 = vmatprep.subr.bf16.mxu0 0
    %1111 = vmatpush1.bf16.msra.mxu0 0
    %1112 = vmatprep.subr.bf16.mxu0 0
    %1113 = vmatpush1.bf16.msra.mxu0 0
    %1114 = vmatprep.mubr.bf16.mxu0 0
    %1115 = vmatmul.mubr.bf16.gmra.mrb[0].mxu0 %v1001
    %v1116 = vpop.f32.mrb[0].mxu0
    %v1117 = vadd.f32 %v1032, %v1116
    %v1118 = vpop.f32.mrb[0].mxu0
    %v1119 = vpop.f32.mrb[0].mxu0
    %v1120 = vadd.f32 %v1032, %v1119
    %v1121 = vpop.f32.mrb[0].mxu0
    %1122 = vmatprep.mubr.bf16.mxu0 0
    %1123 = vmatmul.mubr.bf16.gmra.mrb[0].mxu0 %v1002
    %v1124 = vpop.f32.mrb[0].mxu0
    %v1125 = vadd.f32 %v1032, %v1124
    %v1126 = vpop.f32.mrb[0].mxu0
    %v1127 = vpop.f32.mrb[0].mxu0
    %v1128 = vadd.f32 %v1032, %v1127
    %v1129 = vpop.f32.mrb[0].mxu0
    %1130 = vmatprep.mubr.bf16.mxu0 0
    %1131 = vmatmul.mubr.bf16.gmra.mrb[0].mxu0 %v1003
    %v1132 = vpop.f32.mrb[0].mxu0
    %v1133 = vadd.f32 %v1032, %v1132
    %v1134 = vpop.f32.mrb[0].mxu0
    %v1135 = vpop.f32.mrb[0].mxu0
    %v1136 = vadd.f32 %v1032, %v1135
    %v1137 = vpop.f32.mrb[0].mxu0
    %1138 = vmatprep.mubr.bf16.mxu0 0
    %1139 = vmatmul.mubr.bf16.gmra.mrb[0].mxu0 %v1004
    %v1140 = vpop.f32.mrb[0].mxu0
    %v1141 = vadd.f32 %v1032, %v1140
    %v1142 = vpop.f32.mrb[0].mxu0
    %v1143 = vpop.f32.mrb[0].mxu0
    %v1144 = vadd.f32 %v1032, %v1143
    %v1145 = vpop.f32.mrb[0].mxu0
    %1146 = vmatprep.mubr.bf16.mxu0 0
    %1147 = vmatmul.mubr.bf16.gmra.mrb[0].mxu0 %v1005
    %v1148 = vpop.f32.mrb[0].mxu0
    %v1149 = vadd.f32 %v1032, %v1148
    %v1150 = vpop.f32.mrb[0].mxu0
    %v1151 = vpop.f32.mrb[0].mxu0
    %v1152 = vadd.f32 %v1032, %v1151
    %v1153 = vpop.f32.mrb[0].mxu0
    %1154 = vmatprep.mubr.bf16.mxu0 0
    %1155 = vmatmul.mubr.bf16.gmra.mrb[0].mxu0 %v1006
    %v1156 = vpop.f32.mrb[0].mxu0
    %v1157 = vadd.f32 %v1032, %v1156
    %v1158 = vpop.f32.mrb[0].mxu0
    %v1159 = vpop.f32.mrb[0].mxu0
    %v1160 = vadd.f32 %v1032, %v1159
    %v1161 = vpop.f32.mrb[0].mxu0
    %1162 = vmatprep.mubr.bf16.mxu0 0
    %1163 = vmatmul.mubr.bf16.gmra.mrb[0].mxu0 %v1007
    %v1164 = vpop.f32.mrb[0].mxu0
    %v1165 = vadd.f32 %v1032, %v1164
    %v1166 = vpop.f32.mrb[0].mxu0
    %v1167 = vpop.f32.mrb[0].mxu0
    %v1168 = vadd.f32 %v1032, %v1167
    %v1169 = vpop.f32.mrb[0].mxu0
    %1170 = vmatprep.mubr.bf16.mxu0 0
    %1171 = vmatmul.mubr.bf16.gmra.mrb[0].mxu0 %v1008
    %v1172 = vpop.f32.mrb[0].mxu0
    %v1173 = vadd.f32 %v1032, %v1172
    %v1174 = vpop.f32.mrb[0].mxu0
    %v1175 = vpop.f32.mrb[0].mxu0
    %v1176 = vadd.f32 %v1032, %v1175
    %v1177 = vpop.f32.mrb[0].mxu0
    %1178 = vdwg.mxu0
    %v1179 = vmax.f32 %v1117, 0.0
    %v1180 = vmax.f32 %v1120, 0.0
    %v1181 = vmax.f32 %v1125, 0.0
    %v1182 = vmax.f32 %v1128, 0.0
    %v1183 = vmax.f32 %v1133, 0.0
    %v1184 = vmax.f32 %v1136, 0.0
    %v1185 = vmax.f32 %v1141, 0.0
    %v1186 = vmax.f32 %v1144, 0.0
    %v1187 = vmax.f32 %v1149, 0.0
    %v1188 = vmax.f32 %v1152, 0.0
    %v1189 = vmax.f32 %v1157, 0.0
    %v1190 = vmax.f32 %v1160, 0.0
    %v1191 = vmax.f32 %v1165, 0.0
    %v1192 = vmax.f32 %v1168, 0.0
    %v1193 = vmax.f32 %v1173, 0.0
    %v1194 = vmax.f32 %v1176, 0.0
    %v1195 = vpack.c.bf16 %v1180, %v1179
    %v1196 = vpack.c.bf16 %v1182, %v1181
    %v1197 = vpack.c.bf16 %v1184, %v1183
    %v1198 = vpack.c.bf16 %v1186, %v1185
    %v1199 = vpack.c.bf16 %v1188, %v1187
    %v1200 = vpack.c.bf16 %v1190, %v1189
    %v1201 = vpack.c.bf16 %v1192, %v1191
    %v1202 = vpack.c.bf16 %v1194, %v1193
    %s1203 = scalar_lea.vmem [#allocation2], 320
    %v1204 = vld [vmem:[%s1203] sm:$0xf]
    %v1205 = vld [vmem:[%s1203 + $0x4] sm:$0xf]
    %v1206 = vld [vmem:[%s1203 + $0x8] sm:$0xf]
    %v1207 = vld [vmem:[%s1203 + $0xc] sm:$0xf]
    %v1208 = vld [vmem:[%s1203 + $0x10] sm:$0xf]
    %v1209 = vld [vmem:[%s1203 + $0x14] sm:$0xf]
    %v1210 = vld [vmem:[%s1203 + $0x18] sm:$0xf]
    %v1211 = vld [vmem:[%s1203 + $0x1c] sm:$0xf]
    %v1212 = vld [vmem:[%s1203 + $0x20] sm:$0xf]
    %v1213 = vld [vmem:[%s1203 + $0x24] sm:$0xf]
    %v1214 = vld [vmem:[%s1203 + $0x28] sm:$0xf]
    %v1215 = vld [vmem:[%s1203 + $0x2c] sm:$0xf]
    %v1216 = vld [vmem:[%s1203 + $0x30] sm:$0xf]
    %v1217 = vld [vmem:[%s1203 + $0x34] sm:$0xf]
    %v1218 = vld [vmem:[%s1203 + $0x38] sm:$0xf]
    %v1219 = vld [vmem:[%s1203 + $0x3c] sm:$0xf]
    %s1220 = scalar_lea.vmem %s3, 6
    %v1221 = vld [vmem:[%s1220] sm:$0x1]
    %v1223 = vlaneseq
    %v1224 = vshrl.u32 %v1223, 7
    %v1225 = vsub.s32 0, %v1224
    %v1226 = vrot.slane %v1221, %v1225
    %v1244 = vunpack.c.l.b16 %v1204
    %v1245 = vunpack.c.l.b16 %v1205
    %v1246 = vunpack.c.l.b16 %v1206
    %v1247 = vunpack.c.l.b16 %v1207
    %v1248 = vunpack.c.l.b16 %v1208
    %v1249 = vunpack.c.l.b16 %v1209
    %v1250 = vunpack.c.l.b16 %v1210
    %v1251 = vunpack.c.l.b16 %v1211
    %v1252 = vunpack.c.l.b16 %v1212
    %v1253 = vunpack.c.l.b16 %v1213
    %v1254 = vunpack.c.l.b16 %v1214
    %v1255 = vunpack.c.l.b16 %v1215
    %v1256 = vunpack.c.l.b16 %v1216
    %v1257 = vunpack.c.l.b16 %v1217
    %v1258 = vunpack.c.l.b16 %v1218
    %v1259 = vunpack.c.l.b16 %v1219
    %v1260 = vpack.c.b16 %v1245, %v1244
    %v1261 = vpack.c.b16 %v1247, %v1246
    %v1262 = vpack.c.b16 %v1249, %v1248
    %v1263 = vpack.c.b16 %v1251, %v1250
    %v1264 = vpack.c.b16 %v1253, %v1252
    %v1265 = vpack.c.b16 %v1255, %v1254
    %v1266 = vpack.c.b16 %v1257, %v1256
    %v1267 = vpack.c.b16 %v1259, %v1258
    %1276 = vmatprep.subr.bf16.mxu0 0
    %1277 = vmatpush1.bf16.msra.mxu0 %v1260
    %1278 = vmatprep.subr.bf16.mxu0 0
    %1279 = vmatpush1.bf16.msra.mxu0 %v1261
    %1280 = vmatprep.subr.bf16.mxu0 0
    %1281 = vmatpush1.bf16.msra.mxu0 %v1262
    %1282 = vmatprep.subr.bf16.mxu0 0
    %1283 = vmatpush1.bf16.msra.mxu0 %v1263
    %1284 = vmatprep.subr.bf16.mxu0 0
    %1285 = vmatpush1.bf16.msra.mxu0 %v1264
    %1286 = vmatprep.subr.bf16.mxu0 0
    %1287 = vmatpush1.bf16.msra.mxu0 %v1265
    %1288 = vmatprep.subr.bf16.mxu0 0
    %1289 = vmatpush1.bf16.msra.mxu0 %v1266
    %1290 = vmatprep.subr.bf16.mxu0 0
    %1291 = vmatpush1.bf16.msra.mxu0 %v1267
    %1292 = vmatprep.subr.bf16.mxu0 0
    %1293 = vmatpush1.bf16.msra.mxu0 0
    %1294 = vmatprep.subr.bf16.mxu0 0
    %1295 = vmatpush1.bf16.msra.mxu0 0
    %1296 = vmatprep.subr.bf16.mxu0 0
    %1297 = vmatpush1.bf16.msra.mxu0 0
    %1298 = vmatprep.subr.bf16.mxu0 0
    %1299 = vmatpush1.bf16.msra.mxu0 0
    %1300 = vmatprep.subr.bf16.mxu0 0
    %1301 = vmatpush1.bf16.msra.mxu0 0
    %1302 = vmatprep.subr.bf16.mxu0 0
    %1303 = vmatpush1.bf16.msra.mxu0 0
    %1304 = vmatprep.subr.bf16.mxu0 0
    %1305 = vmatpush1.bf16.msra.mxu0 0
    %1306 = vmatprep.subr.bf16.mxu0 0
    %1307 = vmatpush1.bf16.msra.mxu0 0
    %1308 = vmatprep.mubr.bf16.mxu0 0
    %1309 = vmatmul.mubr.bf16.gmra.mrb[0].mxu0 %v1195
    %v1310 = vpop.f32.mrb[0].mxu0
    %v1311 = vadd.f32 %v1226, %v1310
    %v1312 = vpop.f32.mrb[0].mxu0
    %v1313 = vpop.f32.mrb[0].mxu0
    %v1314 = vadd.f32 %v1226, %v1313
    %v1315 = vpop.f32.mrb[0].mxu0
    %1316 = vmatprep.mubr.bf16.mxu0 0
    %1317 = vmatmul.mubr.bf16.gmra.mrb[0].mxu0 %v1196
    %v1318 = vpop.f32.mrb[0].mxu0
    %v1319 = vadd.f32 %v1226, %v1318
    %v1320 = vpop.f32.mrb[0].mxu0
    %v1321 = vpop.f32.mrb[0].mxu0
    %v1322 = vadd.f32 %v1226, %v1321
    %v1323 = vpop.f32.mrb[0].mxu0
    %1324 = vmatprep.mubr.bf16.mxu0 0
    %1325 = vmatmul.mubr.bf16.gmra.mrb[0].mxu0 %v1197
    %v1326 = vpop.f32.mrb[0].mxu0
    %v1327 = vadd.f32 %v1226, %v1326
    %v1328 = vpop.f32.mrb[0].mxu0
    %v1329 = vpop.f32.mrb[0].mxu0
    %v1330 = vadd.f32 %v1226, %v1329
    %v1331 = vpop.f32.mrb[0].mxu0
    %1332 = vmatprep.mubr.bf16.mxu0 0
    %1333 = vmatmul.mubr.bf16.gmra.mrb[0].mxu0 %v1198
    %v1334 = vpop.f32.mrb[0].mxu0
    %v1335 = vadd.f32 %v1226, %v1334
    %v1336 = vpop.f32.mrb[0].mxu0
    %v1337 = vpop.f32.mrb[0].mxu0
    %v1338 = vadd.f32 %v1226, %v1337
    %v1339 = vpop.f32.mrb[0].mxu0
    %1340 = vmatprep.mubr.bf16.mxu0 0
    %1341 = vmatmul.mubr.bf16.gmra.mrb[0].mxu0 %v1199
    %v1342 = vpop.f32.mrb[0].mxu0
    %v1343 = vadd.f32 %v1226, %v1342
    %v1344 = vpop.f32.mrb[0].mxu0
    %v1345 = vpop.f32.mrb[0].mxu0
    %v1346 = vadd.f32 %v1226, %v1345
    %v1347 = vpop.f32.mrb[0].mxu0
    %1348 = vmatprep.mubr.bf16.mxu0 0
    %1349 = vmatmul.mubr.bf16.gmra.mrb[0].mxu0 %v1200
    %v1350 = vpop.f32.mrb[0].mxu0
    %v1351 = vadd.f32 %v1226, %v1350
    %v1352 = vpop.f32.mrb[0].mxu0
    %v1353 = vpop.f32.mrb[0].mxu0
    %v1354 = vadd.f32 %v1226, %v1353
    %v1355 = vpop.f32.mrb[0].mxu0
    %1356 = vmatprep.mubr.bf16.mxu0 0
    %1357 = vmatmul.mubr.bf16.gmra.mrb[0].mxu0 %v1201
    %v1358 = vpop.f32.mrb[0].mxu0
    %v1359 = vadd.f32 %v1226, %v1358
    %v1360 = vpop.f32.mrb[0].mxu0
    %v1361 = vpop.f32.mrb[0].mxu0
    %v1362 = vadd.f32 %v1226, %v1361
    %v1363 = vpop.f32.mrb[0].mxu0
    %1364 = vmatprep.mubr.bf16.mxu0 0
    %1365 = vmatmul.mubr.bf16.gmra.mrb[0].mxu0 %v1202
    %v1366 = vpop.f32.mrb[0].mxu0
    %v1367 = vadd.f32 %v1226, %v1366
    %v1368 = vpop.f32.mrb[0].mxu0
    %v1369 = vpop.f32.mrb[0].mxu0
    %v1370 = vadd.f32 %v1226, %v1369
    %v1371 = vpop.f32.mrb[0].mxu0
    %1372 = vdwg.mxu0
    %v1373 = vmax.f32 %v1311, 0.0
    %v1374 = vmax.f32 %v1314, 0.0
    %v1375 = vmax.f32 %v1319, 0.0
    %v1376 = vmax.f32 %v1322, 0.0
    %v1377 = vmax.f32 %v1327, 0.0
    %v1378 = vmax.f32 %v1330, 0.0
    %v1379 = vmax.f32 %v1335, 0.0
    %v1380 = vmax.f32 %v1338, 0.0
    %v1381 = vmax.f32 %v1343, 0.0
    %v1382 = vmax.f32 %v1346, 0.0
    %v1383 = vmax.f32 %v1351, 0.0
    %v1384 = vmax.f32 %v1354, 0.0
    %v1385 = vmax.f32 %v1359, 0.0
    %v1386 = vmax.f32 %v1362, 0.0
    %v1387 = vmax.f32 %v1367, 0.0
    %v1388 = vmax.f32 %v1370, 0.0
    %v1389 = vpack.c.bf16 %v1374, %v1373
    %v1390 = vpack.c.bf16 %v1376, %v1375
    %v1391 = vpack.c.bf16 %v1378, %v1377
    %v1392 = vpack.c.bf16 %v1380, %v1379
    %v1393 = vpack.c.bf16 %v1382, %v1381
    %v1394 = vpack.c.bf16 %v1384, %v1383
    %v1395 = vpack.c.bf16 %v1386, %v1385
    %v1396 = vpack.c.bf16 %v1388, %v1387
    %s1397 = scalar_lea.vmem [#allocation2], 384
    %v1398 = vld [vmem:[%s1397] sm:$0xf]
    %v1399 = vld [vmem:[%s1397 + $0x4] sm:$0xf]
    %v1400 = vld [vmem:[%s1397 + $0x8] sm:$0xf]
    %v1401 = vld [vmem:[%s1397 + $0xc] sm:$0xf]
    %v1402 = vld [vmem:[%s1397 + $0x10] sm:$0xf]
    %v1403 = vld [vmem:[%s1397 + $0x14] sm:$0xf]
    %v1404 = vld [vmem:[%s1397 + $0x18] sm:$0xf]
    %v1405 = vld [vmem:[%s1397 + $0x1c] sm:$0xf]
    %v1406 = vld [vmem:[%s1397 + $0x20] sm:$0xf]
    %v1407 = vld [vmem:[%s1397 + $0x24] sm:$0xf]
    %v1408 = vld [vmem:[%s1397 + $0x28] sm:$0xf]
    %v1409 = vld [vmem:[%s1397 + $0x2c] sm:$0xf]
    %v1410 = vld [vmem:[%s1397 + $0x30] sm:$0xf]
    %v1411 = vld [vmem:[%s1397 + $0x34] sm:$0xf]
    %v1412 = vld [vmem:[%s1397 + $0x38] sm:$0xf]
    %v1413 = vld [vmem:[%s1397 + $0x3c] sm:$0xf]
    %s1414 = scalar_lea.vmem %s3, 7
    %v1415 = vld [vmem:[%s1414] sm:$0x1]
    %v1417 = vlaneseq
    %v1418 = vshrl.u32 %v1417, 7
    %v1419 = vsub.s32 0, %v1418
    %v1420 = vrot.slane %v1415, %v1419
    %v1438 = vunpack.c.l.b16 %v1398
    %v1439 = vunpack.c.l.b16 %v1399
    %v1440 = vunpack.c.l.b16 %v1400
    %v1441 = vunpack.c.l.b16 %v1401
    %v1442 = vunpack.c.l.b16 %v1402
    %v1443 = vunpack.c.l.b16 %v1403
    %v1444 = vunpack.c.l.b16 %v1404
    %v1445 = vunpack.c.l.b16 %v1405
    %v1446 = vunpack.c.l.b16 %v1406
    %v1447 = vunpack.c.l.b16 %v1407
    %v1448 = vunpack.c.l.b16 %v1408
    %v1449 = vunpack.c.l.b16 %v1409
    %v1450 = vunpack.c.l.b16 %v1410
    %v1451 = vunpack.c.l.b16 %v1411
    %v1452 = vunpack.c.l.b16 %v1412
    %v1453 = vunpack.c.l.b16 %v1413
    %v1454 = vpack.c.b16 %v1439, %v1438
    %v1455 = vpack.c.b16 %v1441, %v1440
    %v1456 = vpack.c.b16 %v1443, %v1442
    %v1457 = vpack.c.b16 %v1445, %v1444
    %v1458 = vpack.c.b16 %v1447, %v1446
    %v1459 = vpack.c.b16 %v1449, %v1448
    %v1460 = vpack.c.b16 %v1451, %v1450
    %v1461 = vpack.c.b16 %v1453, %v1452
    %1470 = vmatprep.subr.bf16.mxu0 0
    %1471 = vmatpush1.bf16.msra.mxu0 %v1454
    %1472 = vmatprep.subr.bf16.mxu0 0
    %1473 = vmatpush1.bf16.msra.mxu0 %v1455
    %1474 = vmatprep.subr.bf16.mxu0 0
    %1475 = vmatpush1.bf16.msra.mxu0 %v1456
    %1476 = vmatprep.subr.bf16.mxu0 0
    %1477 = vmatpush1.bf16.msra.mxu0 %v1457
    %1478 = vmatprep.subr.bf16.mxu0 0
    %1479 = vmatpush1.bf16.msra.mxu0 %v1458
    %1480 = vmatprep.subr.bf16.mxu0 0
    %1481 = vmatpush1.bf16.msra.mxu0 %v1459
    %1482 = vmatprep.subr.bf16.mxu0 0
    %1483 = vmatpush1.bf16.msra.mxu0 %v1460
    %1484 = vmatprep.subr.bf16.mxu0 0
    %1485 = vmatpush1.bf16.msra.mxu0 %v1461
    %1486 = vmatprep.subr.bf16.mxu0 0
    %1487 = vmatpush1.bf16.msra.mxu0 0
    %1488 = vmatprep.subr.bf16.mxu0 0
    %1489 = vmatpush1.bf16.msra.mxu0 0
    %1490 = vmatprep.subr.bf16.mxu0 0
    %1491 = vmatpush1.bf16.msra.mxu0 0
    %1492 = vmatprep.subr.bf16.mxu0 0
    %1493 = vmatpush1.bf16.msra.mxu0 0
    %1494 = vmatprep.subr.bf16.mxu0 0
    %1495 = vmatpush1.bf16.msra.mxu0 0
    %1496 = vmatprep.subr.bf16.mxu0 0
    %1497 = vmatpush1.bf16.msra.mxu0 0
    %1498 = vmatprep.subr.bf16.mxu0 0
    %1499 = vmatpush1.bf16.msra.mxu0 0
    %1500 = vmatprep.subr.bf16.mxu0 0
    %1501 = vmatpush1.bf16.msra.mxu0 0
    %1502 = vmatprep.mubr.bf16.mxu0 0
    %1503 = vmatmul.mubr.bf16.gmra.mrb[0].mxu0 %v1389
    %v1504 = vpop.f32.mrb[0].mxu0
    %v1505 = vadd.f32 %v1420, %v1504
    %v1506 = vpop.f32.mrb[0].mxu0
    %v1507 = vpop.f32.mrb[0].mxu0
    %v1508 = vadd.f32 %v1420, %v1507
    %v1509 = vpop.f32.mrb[0].mxu0
    %1510 = vmatprep.mubr.bf16.mxu0 0
    %1511 = vmatmul.mubr.bf16.gmra.mrb[0].mxu0 %v1390
    %v1512 = vpop.f32.mrb[0].mxu0
    %v1513 = vadd.f32 %v1420, %v1512
    %v1514 = vpop.f32.mrb[0].mxu0
    %v1515 = vpop.f32.mrb[0].mxu0
    %v1516 = vadd.f32 %v1420, %v1515
    %v1517 = vpop.f32.mrb[0].mxu0
    %1518 = vmatprep.mubr.bf16.mxu0 0
    %1519 = vmatmul.mubr.bf16.gmra.mrb[0].mxu0 %v1391
    %v1520 = vpop.f32.mrb[0].mxu0
    %v1521 = vadd.f32 %v1420, %v1520
    %v1522 = vpop.f32.mrb[0].mxu0
    %v1523 = vpop.f32.mrb[0].mxu0
    %v1524 = vadd.f32 %v1420, %v1523
    %v1525 = vpop.f32.mrb[0].mxu0
    %1526 = vmatprep.mubr.bf16.mxu0 0
    %1527 = vmatmul.mubr.bf16.gmra.mrb[0].mxu0 %v1392
    %v1528 = vpop.f32.mrb[0].mxu0
    %v1529 = vadd.f32 %v1420, %v1528
    %v1530 = vpop.f32.mrb[0].mxu0
    %v1531 = vpop.f32.mrb[0].mxu0
    %v1532 = vadd.f32 %v1420, %v1531
    %v1533 = vpop.f32.mrb[0].mxu0
    %1534 = vmatprep.mubr.bf16.mxu0 0
    %1535 = vmatmul.mubr.bf16.gmra.mrb[0].mxu0 %v1393
    %v1536 = vpop.f32.mrb[0].mxu0
    %v1537 = vadd.f32 %v1420, %v1536
    %v1538 = vpop.f32.mrb[0].mxu0
    %v1539 = vpop.f32.mrb[0].mxu0
    %v1540 = vadd.f32 %v1420, %v1539
    %v1541 = vpop.f32.mrb[0].mxu0
    %1542 = vmatprep.mubr.bf16.mxu0 0
    %1543 = vmatmul.mubr.bf16.gmra.mrb[0].mxu0 %v1394
    %v1544 = vpop.f32.mrb[0].mxu0
    %v1545 = vadd.f32 %v1420, %v1544
    %v1546 = vpop.f32.mrb[0].mxu0
    %v1547 = vpop.f32.mrb[0].mxu0
    %v1548 = vadd.f32 %v1420, %v1547
    %v1549 = vpop.f32.mrb[0].mxu0
    %1550 = vmatprep.mubr.bf16.mxu0 0
    %1551 = vmatmul.mubr.bf16.gmra.mrb[0].mxu0 %v1395
    %v1552 = vpop.f32.mrb[0].mxu0
    %v1553 = vadd.f32 %v1420, %v1552
    %v1554 = vpop.f32.mrb[0].mxu0
    %v1555 = vpop.f32.mrb[0].mxu0
    %v1556 = vadd.f32 %v1420, %v1555
    %v1557 = vpop.f32.mrb[0].mxu0
    %1558 = vmatprep.mubr.bf16.mxu0 0
    %1559 = vmatmul.mubr.bf16.gmra.mrb[0].mxu0 %v1396
    %v1560 = vpop.f32.mrb[0].mxu0
    %v1561 = vadd.f32 %v1420, %v1560
    %v1562 = vpop.f32.mrb[0].mxu0
    %v1563 = vpop.f32.mrb[0].mxu0
    %v1564 = vadd.f32 %v1420, %v1563
    %v1565 = vpop.f32.mrb[0].mxu0
    %1566 = vdwg.mxu0
    %v1567 = vadd.f32 %v745, %v1505
    %v1568 = vadd.f32 %v748, %v1508
    %v1569 = vadd.f32 %v753, %v1513
    %v1570 = vadd.f32 %v756, %v1516
    %v1571 = vadd.f32 %v761, %v1521
    %v1572 = vadd.f32 %v764, %v1524
    %v1573 = vadd.f32 %v769, %v1529
    %v1574 = vadd.f32 %v772, %v1532
    %v1575 = vadd.f32 %v777, %v1537
    %v1576 = vadd.f32 %v780, %v1540
    %v1577 = vadd.f32 %v785, %v1545
    %v1578 = vadd.f32 %v788, %v1548
    %v1579 = vadd.f32 %v793, %v1553
    %v1580 = vadd.f32 %v796, %v1556
    %v1581 = vadd.f32 %v801, %v1561
    %v1582 = vadd.f32 %v804, %v1564
    %v1583 = vld [vmem:[%s0 + $0x40] sm:$0xf]
    %v1584 = vld [vmem:[%s0 + $0x44] sm:$0xf]
    %v1585 = vld [vmem:[%s0 + $0x48] sm:$0xf]
    %v1586 = vld [vmem:[%s0 + $0x4c] sm:$0xf]
    %v1587 = vld [vmem:[%s0 + $0x50] sm:$0xf]
    %v1588 = vld [vmem:[%s0 + $0x54] sm:$0xf]
    %v1589 = vld [vmem:[%s0 + $0x58] sm:$0xf]
    %v1590 = vld [vmem:[%s0 + $0x5c] sm:$0xf]
    %v1591 = vld [vmem:[%s0 + $0x60] sm:$0xf]
    %v1592 = vld [vmem:[%s0 + $0x64] sm:$0xf]
    %v1593 = vld [vmem:[%s0 + $0x68] sm:$0xf]
    %v1594 = vld [vmem:[%s0 + $0x6c] sm:$0xf]
    %v1595 = vld [vmem:[%s0 + $0x70] sm:$0xf]
    %v1596 = vld [vmem:[%s0 + $0x74] sm:$0xf]
    %v1597 = vld [vmem:[%s0 + $0x78] sm:$0xf]
    %v1598 = vld [vmem:[%s0 + $0x7c] sm:$0xf]
    %v1615 = vunpack.c.l.b16 %v1583
    %v1616 = vunpack.c.l.b16 %v1584
    %v1617 = vunpack.c.l.b16 %v1585
    %v1618 = vunpack.c.l.b16 %v1586
    %v1619 = vunpack.c.l.b16 %v1587
    %v1620 = vunpack.c.l.b16 %v1588
    %v1621 = vunpack.c.l.b16 %v1589
    %v1622 = vunpack.c.l.b16 %v1590
    %v1623 = vunpack.c.l.b16 %v1591
    %v1624 = vunpack.c.l.b16 %v1592
    %v1625 = vunpack.c.l.b16 %v1593
    %v1626 = vunpack.c.l.b16 %v1594
    %v1627 = vunpack.c.l.b16 %v1595
    %v1628 = vunpack.c.l.b16 %v1596
    %v1629 = vunpack.c.l.b16 %v1597
    %v1630 = vunpack.c.l.b16 %v1598
    %v1631 = vpack.c.b16 %v1616, %v1615
    %v1632 = vpack.c.b16 %v1618, %v1617
    %v1633 = vpack.c.b16 %v1620, %v1619
    %v1634 = vpack.c.b16 %v1622, %v1621
    %v1635 = vpack.c.b16 %v1624, %v1623
    %v1636 = vpack.c.b16 %v1626, %v1625
    %v1637 = vpack.c.b16 %v1628, %v1627
    %v1638 = vpack.c.b16 %v1630, %v1629
    %v1640 = vsel %vm104, %v1631, 0
    %v1643 = vsel %vm104, %v1632, 0
    %v1646 = vsel %vm104, %v1633, 0
    %v1649 = vsel %vm104, %v1634, 0
    %v1652 = vsel %vm104, %v1635, 0
    %v1655 = vsel %vm104, %v1636, 0
    %v1658 = vsel %vm104, %v1637, 0
    %v1661 = vsel %vm104, %v1638, 0
    %1663 = vmatprep.subr.bf16.mxu0 0
    %1664 = vmatpush1.bf16.msra.mxu0 %v102
    %1665 = vmatprep.subr.bf16.mxu0 0
    %1666 = vmatpush1.bf16.msra.mxu0 0
    %1667 = vmatprep.subr.bf16.mxu0 0
    %1668 = vmatpush1.bf16.msra.mxu0 0
    %1669 = vmatprep.subr.bf16.mxu0 0
    %1670 = vmatpush1.bf16.msra.mxu0 0
    %1671 = vmatprep.subr.bf16.mxu0 0
    %1672 = vmatpush1.bf16.msra.mxu0 0
    %1673 = vmatprep.subr.bf16.mxu0 0
    %1674 = vmatpush1.bf16.msra.mxu0 0
    %1675 = vmatprep.subr.bf16.mxu0 0
    %1676 = vmatpush1.bf16.msra.mxu0 0
    %1677 = vmatprep.subr.bf16.mxu0 0
    %1678 = vmatpush1.bf16.msra.mxu0 0
    %1679 = vmatprep.subr.bf16.mxu0 0
    %1680 = vmatpush1.bf16.msra.mxu0 0
    %1681 = vmatprep.subr.bf16.mxu0 0
    %1682 = vmatpush1.bf16.msra.mxu0 0
    %1683 = vmatprep.subr.bf16.mxu0 0
    %1684 = vmatpush1.bf16.msra.mxu0 0
    %1685 = vmatprep.subr.bf16.mxu0 0
    %1686 = vmatpush1.bf16.msra.mxu0 0
    %1687 = vmatprep.subr.bf16.mxu0 0
    %1688 = vmatpush1.bf16.msra.mxu0 0
    %1689 = vmatprep.subr.bf16.mxu0 0
    %1690 = vmatpush1.bf16.msra.mxu0 0
    %1691 = vmatprep.subr.bf16.mxu0 0
    %1692 = vmatpush1.bf16.msra.mxu0 0
    %1693 = vmatprep.subr.bf16.mxu0 0
    %1694 = vmatpush1.bf16.msra.mxu0 0
    %1695 = vmatprep.mubr.bf16.mxu0 0
    %1696 = vmatmul.mubr.bf16.gmra.mrb[0].mxu0 %v1640
    %v1697 = vpop.f32.mrb[0].mxu0
    %v1698 = vadd.f32 %v56, %v1697
    %v1699 = vpop.f32.mrb[0].mxu0
    %v1700 = vpop.f32.mrb[0].mxu0
    %v1701 = vadd.f32 %v56, %v1700
    %v1702 = vpop.f32.mrb[0].mxu0
    %1703 = vmatprep.mubr.bf16.mxu0 0
    %1704 = vmatmul.mubr.bf16.gmra.mrb[0].mxu0 %v1643
    %v1705 = vpop.f32.mrb[0].mxu0
    %v1706 = vadd.f32 %v56, %v1705
    %v1707 = vpop.f32.mrb[0].mxu0
    %v1708 = vpop.f32.mrb[0].mxu0
    %v1709 = vadd.f32 %v56, %v1708
    %v1710 = vpop.f32.mrb[0].mxu0
    %1711 = vmatprep.mubr.bf16.mxu0 0
    %1712 = vmatmul.mubr.bf16.gmra.mrb[0].mxu0 %v1646
    %v1713 = vpop.f32.mrb[0].mxu0
    %v1714 = vadd.f32 %v56, %v1713
    %v1715 = vpop.f32.mrb[0].mxu0
    %v1716 = vpop.f32.mrb[0].mxu0
    %v1717 = vadd.f32 %v56, %v1716
    %v1718 = vpop.f32.mrb[0].mxu0
    %1719 = vmatprep.mubr.bf16.mxu0 0
    %1720 = vmatmul.mubr.bf16.gmra.mrb[0].mxu0 %v1649
    %v1721 = vpop.f32.mrb[0].mxu0
    %v1722 = vadd.f32 %v56, %v1721
    %v1723 = vpop.f32.mrb[0].mxu0
    %v1724 = vpop.f32.mrb[0].mxu0
    %v1725 = vadd.f32 %v56, %v1724
    %v1726 = vpop.f32.mrb[0].mxu0
    %1727 = vmatprep.mubr.bf16.mxu0 0
    %1728 = vmatmul.mubr.bf16.gmra.mrb[0].mxu0 %v1652
    %v1729 = vpop.f32.mrb[0].mxu0
    %v1730 = vadd.f32 %v56, %v1729
    %v1731 = vpop.f32.mrb[0].mxu0
    %v1732 = vpop.f32.mrb[0].mxu0
    %v1733 = vadd.f32 %v56, %v1732
    %v1734 = vpop.f32.mrb[0].mxu0
    %1735 = vmatprep.mubr.bf16.mxu0 0
    %1736 = vmatmul.mubr.bf16.gmra.mrb[0].mxu0 %v1655
    %v1737 = vpop.f32.mrb[0].mxu0
    %v1738 = vadd.f32 %v56, %v1737
    %v1739 = vpop.f32.mrb[0].mxu0
    %v1740 = vpop.f32.mrb[0].mxu0
    %v1741 = vadd.f32 %v56, %v1740
    %v1742 = vpop.f32.mrb[0].mxu0
    %1743 = vmatprep.mubr.bf16.mxu0 0
    %1744 = vmatmul.mubr.bf16.gmra.mrb[0].mxu0 %v1658
    %v1745 = vpop.f32.mrb[0].mxu0
    %v1746 = vadd.f32 %v56, %v1745
    %v1747 = vpop.f32.mrb[0].mxu0
    %v1748 = vpop.f32.mrb[0].mxu0
    %v1749 = vadd.f32 %v56, %v1748
    %v1750 = vpop.f32.mrb[0].mxu0
    %1751 = vmatprep.mubr.bf16.mxu0 0
    %1752 = vmatmul.mubr.bf16.gmra.mrb[0].mxu0 %v1661
    %v1753 = vpop.f32.mrb[0].mxu0
    %v1754 = vadd.f32 %v56, %v1753
    %v1755 = vpop.f32.mrb[0].mxu0
    %v1756 = vpop.f32.mrb[0].mxu0
    %v1757 = vadd.f32 %v56, %v1756
    %v1758 = vpop.f32.mrb[0].mxu0
    %1759 = vdwg.mxu0
    %v1760 = vmax.f32 %v1698, 0.0
    %v1761 = vmax.f32 %v1701, 0.0
    %v1762 = vmax.f32 %v1706, 0.0
    %v1763 = vmax.f32 %v1709, 0.0
    %v1764 = vmax.f32 %v1714, 0.0
    %v1765 = vmax.f32 %v1717, 0.0
    %v1766 = vmax.f32 %v1722, 0.0
    %v1767 = vmax.f32 %v1725, 0.0
    %v1768 = vmax.f32 %v1730, 0.0
    %v1769 = vmax.f32 %v1733, 0.0
    %v1770 = vmax.f32 %v1738, 0.0
    %v1771 = vmax.f32 %v1741, 0.0
    %v1772 = vmax.f32 %v1746, 0.0
    %v1773 = vmax.f32 %v1749, 0.0
    %v1774 = vmax.f32 %v1754, 0.0
    %v1775 = vmax.f32 %v1757, 0.0
    %v1776 = vpack.c.bf16 %v1761, %v1760
    %v1777 = vpack.c.bf16 %v1763, %v1762
    %v1778 = vpack.c.bf16 %v1765, %v1764
    %v1779 = vpack.c.bf16 %v1767, %v1766
    %v1780 = vpack.c.bf16 %v1769, %v1768
    %v1781 = vpack.c.bf16 %v1771, %v1770
    %v1782 = vpack.c.bf16 %v1773, %v1772
    %v1783 = vpack.c.bf16 %v1775, %v1774
    %1784 = vmatprep.subr.bf16.mxu0 0
    %1785 = vmatpush1.bf16.msra.mxu0 %v306
    %1786 = vmatprep.subr.bf16.mxu0 0
    %1787 = vmatpush1.bf16.msra.mxu0 %v307
    %1788 = vmatprep.subr.bf16.mxu0 0
    %1789 = vmatpush1.bf16.msra.mxu0 %v308
    %1790 = vmatprep.subr.bf16.mxu0 0
    %1791 = vmatpush1.bf16.msra.mxu0 %v309
    %1792 = vmatprep.subr.bf16.mxu0 0
    %1793 = vmatpush1.bf16.msra.mxu0 %v310
    %1794 = vmatprep.subr.bf16.mxu0 0
    %1795 = vmatpush1.bf16.msra.mxu0 %v311
    %1796 = vmatprep.subr.bf16.mxu0 0
    %1797 = vmatpush1.bf16.msra.mxu0 %v312
    %1798 = vmatprep.subr.bf16.mxu0 0
    %1799 = vmatpush1.bf16.msra.mxu0 %v313
    %1800 = vmatprep.subr.bf16.mxu0 0
    %1801 = vmatpush1.bf16.msra.mxu0 0
    %1802 = vmatprep.subr.bf16.mxu0 0
    %1803 = vmatpush1.bf16.msra.mxu0 0
    %1804 = vmatprep.subr.bf16.mxu0 0
    %1805 = vmatpush1.bf16.msra.mxu0 0
    %1806 = vmatprep.subr.bf16.mxu0 0
    %1807 = vmatpush1.bf16.msra.mxu0 0
    %1808 = vmatprep.subr.bf16.mxu0 0
    %1809 = vmatpush1.bf16.msra.mxu0 0
    %1810 = vmatprep.subr.bf16.mxu0 0
    %1811 = vmatpush1.bf16.msra.mxu0 0
    %1812 = vmatprep.subr.bf16.mxu0 0
    %1813 = vmatpush1.bf16.msra.mxu0 0
    %1814 = vmatprep.subr.bf16.mxu0 0
    %1815 = vmatpush1.bf16.msra.mxu0 0
    %1816 = vmatprep.mubr.bf16.mxu0 0
    %1817 = vmatmul.mubr.bf16.gmra.mrb[0].mxu0 %v1776
    %v1818 = vpop.f32.mrb[0].mxu0
    %v1819 = vadd.f32 %v272, %v1818
    %v1820 = vpop.f32.mrb[0].mxu0
    %v1821 = vpop.f32.mrb[0].mxu0
    %v1822 = vadd.f32 %v272, %v1821
    %v1823 = vpop.f32.mrb[0].mxu0
    %1824 = vmatprep.mubr.bf16.mxu0 0
    %1825 = vmatmul.mubr.bf16.gmra.mrb[0].mxu0 %v1777
    %v1826 = vpop.f32.mrb[0].mxu0
    %v1827 = vadd.f32 %v272, %v1826
    %v1828 = vpop.f32.mrb[0].mxu0
    %v1829 = vpop.f32.mrb[0].mxu0
    %v1830 = vadd.f32 %v272, %v1829
    %v1831 = vpop.f32.mrb[0].mxu0
    %1832 = vmatprep.mubr.bf16.mxu0 0
    %1833 = vmatmul.mubr.bf16.gmra.mrb[0].mxu0 %v1778
    %v1834 = vpop.f32.mrb[0].mxu0
    %v1835 = vadd.f32 %v272, %v1834
    %v1836 = vpop.f32.mrb[0].mxu0
    %v1837 = vpop.f32.mrb[0].mxu0
    %v1838 = vadd.f32 %v272, %v1837
    %v1839 = vpop.f32.mrb[0].mxu0
    %1840 = vmatprep.mubr.bf16.mxu0 0
    %1841 = vmatmul.mubr.bf16.gmra.mrb[0].mxu0 %v1779
    %v1842 = vpop.f32.mrb[0].mxu0
    %v1843 = vadd.f32 %v272, %v1842
    %v1844 = vpop.f32.mrb[0].mxu0
    %v1845 = vpop.f32.mrb[0].mxu0
    %v1846 = vadd.f32 %v272, %v1845
    %v1847 = vpop.f32.mrb[0].mxu0
    %1848 = vmatprep.mubr.bf16.mxu0 0
    %1849 = vmatmul.mubr.bf16.gmra.mrb[0].mxu0 %v1780
    %v1850 = vpop.f32.mrb[0].mxu0
    %v1851 = vadd.f32 %v272, %v1850
    %v1852 = vpop.f32.mrb[0].mxu0
    %v1853 = vpop.f32.mrb[0].mxu0
    %v1854 = vadd.f32 %v272, %v1853
    %v1855 = vpop.f32.mrb[0].mxu0
    %1856 = vmatprep.mubr.bf16.mxu0 0
    %1857 = vmatmul.mubr.bf16.gmra.mrb[0].mxu0 %v1781
    %v1858 = vpop.f32.mrb[0].mxu0
    %v1859 = vadd.f32 %v272, %v1858
    %v1860 = vpop.f32.mrb[0].mxu0
    %v1861 = vpop.f32.mrb[0].mxu0
    %v1862 = vadd.f32 %v272, %v1861
    %v1863 = vpop.f32.mrb[0].mxu0
    %1864 = vmatprep.mubr.bf16.mxu0 0
    %1865 = vmatmul.mubr.bf16.gmra.mrb[0].mxu0 %v1782
    %v1866 = vpop.f32.mrb[0].mxu0
    %v1867 = vadd.f32 %v272, %v1866
    %v1868 = vpop.f32.mrb[0].mxu0
    %v1869 = vpop.f32.mrb[0].mxu0
    %v1870 = vadd.f32 %v272, %v1869
    %v1871 = vpop.f32.mrb[0].mxu0
    %1872 = vmatprep.mubr.bf16.mxu0 0
    %1873 = vmatmul.mubr.bf16.gmra.mrb[0].mxu0 %v1783
    %v1874 = vpop.f32.mrb[0].mxu0
    %v1875 = vadd.f32 %v272, %v1874
    %v1876 = vpop.f32.mrb[0].mxu0
    %v1877 = vpop.f32.mrb[0].mxu0
    %v1878 = vadd.f32 %v272, %v1877
    %v1879 = vpop.f32.mrb[0].mxu0
    %1880 = vdwg.mxu0
    %v1881 = vmax.f32 %v1819, 0.0
    %v1882 = vmax.f32 %v1822, 0.0
    %v1883 = vmax.f32 %v1827, 0.0
    %v1884 = vmax.f32 %v1830, 0.0
    %v1885 = vmax.f32 %v1835, 0.0
    %v1886 = vmax.f32 %v1838, 0.0
    %v1887 = vmax.f32 %v1843, 0.0
    %v1888 = vmax.f32 %v1846, 0.0
    %v1889 = vmax.f32 %v1851, 0.0
    %v1890 = vmax.f32 %v1854, 0.0
    %v1891 = vmax.f32 %v1859, 0.0
    %v1892 = vmax.f32 %v1862, 0.0
    %v1893 = vmax.f32 %v1867, 0.0
    %v1894 = vmax.f32 %v1870, 0.0
    %v1895 = vmax.f32 %v1875, 0.0
    %v1896 = vmax.f32 %v1878, 0.0
    %v1897 = vpack.c.bf16 %v1882, %v1881
    %v1898 = vpack.c.bf16 %v1884, %v1883
    %v1899 = vpack.c.bf16 %v1886, %v1885
    %v1900 = vpack.c.bf16 %v1888, %v1887
    %v1901 = vpack.c.bf16 %v1890, %v1889
    %v1902 = vpack.c.bf16 %v1892, %v1891
    %v1903 = vpack.c.bf16 %v1894, %v1893
    %v1904 = vpack.c.bf16 %v1896, %v1895
    %1905 = vmatprep.subr.bf16.mxu0 0
    %1906 = vmatpush1.bf16.msra.mxu0 %v500
    %1907 = vmatprep.subr.bf16.mxu0 0
    %1908 = vmatpush1.bf16.msra.mxu0 %v501
    %1909 = vmatprep.subr.bf16.mxu0 0
    %1910 = vmatpush1.bf16.msra.mxu0 %v502
    %1911 = vmatprep.subr.bf16.mxu0 0
    %1912 = vmatpush1.bf16.msra.mxu0 %v503
    %1913 = vmatprep.subr.bf16.mxu0 0
    %1914 = vmatpush1.bf16.msra.mxu0 %v504
    %1915 = vmatprep.subr.bf16.mxu0 0
    %1916 = vmatpush1.bf16.msra.mxu0 %v505
    %1917 = vmatprep.subr.bf16.mxu0 0
    %1918 = vmatpush1.bf16.msra.mxu0 %v506
    %1919 = vmatprep.subr.bf16.mxu0 0
    %1920 = vmatpush1.bf16.msra.mxu0 %v507
    %1921 = vmatprep.subr.bf16.mxu0 0
    %1922 = vmatpush1.bf16.msra.mxu0 0
    %1923 = vmatprep.subr.bf16.mxu0 0
    %1924 = vmatpush1.bf16.msra.mxu0 0
    %1925 = vmatprep.subr.bf16.mxu0 0
    %1926 = vmatpush1.bf16.msra.mxu0 0
    %1927 = vmatprep.subr.bf16.mxu0 0
    %1928 = vmatpush1.bf16.msra.mxu0 0
    %1929 = vmatprep.subr.bf16.mxu0 0
    %1930 = vmatpush1.bf16.msra.mxu0 0
    %1931 = vmatprep.subr.bf16.mxu0 0
    %1932 = vmatpush1.bf16.msra.mxu0 0
    %1933 = vmatprep.subr.bf16.mxu0 0
    %1934 = vmatpush1.bf16.msra.mxu0 0
    %1935 = vmatprep.subr.bf16.mxu0 0
    %1936 = vmatpush1.bf16.msra.mxu0 0
    %1937 = vmatprep.mubr.bf16.mxu0 0
    %1938 = vmatmul.mubr.bf16.gmra.mrb[0].mxu0 %v1897
    %v1939 = vpop.f32.mrb[0].mxu0
    %v1940 = vadd.f32 %v466, %v1939
    %v1941 = vpop.f32.mrb[0].mxu0
    %v1942 = vpop.f32.mrb[0].mxu0
    %v1943 = vadd.f32 %v466, %v1942
    %v1944 = vpop.f32.mrb[0].mxu0
    %1945 = vmatprep.mubr.bf16.mxu0 0
    %1946 = vmatmul.mubr.bf16.gmra.mrb[0].mxu0 %v1898
    %v1947 = vpop.f32.mrb[0].mxu0
    %v1948 = vadd.f32 %v466, %v1947
    %v1949 = vpop.f32.mrb[0].mxu0
    %v1950 = vpop.f32.mrb[0].mxu0
    %v1951 = vadd.f32 %v466, %v1950
    %v1952 = vpop.f32.mrb[0].mxu0
    %1953 = vmatprep.mubr.bf16.mxu0 0
    %1954 = vmatmul.mubr.bf16.gmra.mrb[0].mxu0 %v1899
    %v1955 = vpop.f32.mrb[0].mxu0
    %v1956 = vadd.f32 %v466, %v1955
    %v1957 = vpop.f32.mrb[0].mxu0
    %v1958 = vpop.f32.mrb[0].mxu0
    %v1959 = vadd.f32 %v466, %v1958
    %v1960 = vpop.f32.mrb[0].mxu0
    %1961 = vmatprep.mubr.bf16.mxu0 0
    %1962 = vmatmul.mubr.bf16.gmra.mrb[0].mxu0 %v1900
    %v1963 = vpop.f32.mrb[0].mxu0
    %v1964 = vadd.f32 %v466, %v1963
    %v1965 = vpop.f32.mrb[0].mxu0
    %v1966 = vpop.f32.mrb[0].mxu0
    %v1967 = vadd.f32 %v466, %v1966
    %v1968 = vpop.f32.mrb[0].mxu0
    %1969 = vmatprep.mubr.bf16.mxu0 0
    %1970 = vmatmul.mubr.bf16.gmra.mrb[0].mxu0 %v1901
    %v1971 = vpop.f32.mrb[0].mxu0
    %v1972 = vadd.f32 %v466, %v1971
    %v1973 = vpop.f32.mrb[0].mxu0
    %v1974 = vpop.f32.mrb[0].mxu0
    %v1975 = vadd.f32 %v466, %v1974
    %v1976 = vpop.f32.mrb[0].mxu0
    %1977 = vmatprep.mubr.bf16.mxu0 0
    %1978 = vmatmul.mubr.bf16.gmra.mrb[0].mxu0 %v1902
    %v1979 = vpop.f32.mrb[0].mxu0
    %v1980 = vadd.f32 %v466, %v1979
    %v1981 = vpop.f32.mrb[0].mxu0
    %v1982 = vpop.f32.mrb[0].mxu0
    %v1983 = vadd.f32 %v466, %v1982
    %v1984 = vpop.f32.mrb[0].mxu0
    %1985 = vmatprep.mubr.bf16.mxu0 0
    %1986 = vmatmul.mubr.bf16.gmra.mrb[0].mxu0 %v1903
    %v1987 = vpop.f32.mrb[0].mxu0
    %v1988 = vadd.f32 %v466, %v1987
    %v1989 = vpop.f32.mrb[0].mxu0
    %v1990 = vpop.f32.mrb[0].mxu0
    %v1991 = vadd.f32 %v466, %v1990
    %v1992 = vpop.f32.mrb[0].mxu0
    %1993 = vmatprep.mubr.bf16.mxu0 0
    %1994 = vmatmul.mubr.bf16.gmra.mrb[0].mxu0 %v1904
    %v1995 = vpop.f32.mrb[0].mxu0
    %v1996 = vadd.f32 %v466, %v1995
    %v1997 = vpop.f32.mrb[0].mxu0
    %v1998 = vpop.f32.mrb[0].mxu0
    %v1999 = vadd.f32 %v466, %v1998
    %v2000 = vpop.f32.mrb[0].mxu0
    %2001 = vdwg.mxu0
    %v2002 = vmax.f32 %v1940, 0.0
    %v2003 = vmax.f32 %v1943, 0.0
    %v2004 = vmax.f32 %v1948, 0.0
    %v2005 = vmax.f32 %v1951, 0.0
    %v2006 = vmax.f32 %v1956, 0.0
    %v2007 = vmax.f32 %v1959, 0.0
    %v2008 = vmax.f32 %v1964, 0.0
    %v2009 = vmax.f32 %v1967, 0.0
    %v2010 = vmax.f32 %v1972, 0.0
    %v2011 = vmax.f32 %v1975, 0.0
    %v2012 = vmax.f32 %v1980, 0.0
    %v2013 = vmax.f32 %v1983, 0.0
    %v2014 = vmax.f32 %v1988, 0.0
    %v2015 = vmax.f32 %v1991, 0.0
    %v2016 = vmax.f32 %v1996, 0.0
    %v2017 = vmax.f32 %v1999, 0.0
    %v2018 = vpack.c.bf16 %v2003, %v2002
    %v2019 = vpack.c.bf16 %v2005, %v2004
    %v2020 = vpack.c.bf16 %v2007, %v2006
    %v2021 = vpack.c.bf16 %v2009, %v2008
    %v2022 = vpack.c.bf16 %v2011, %v2010
    %v2023 = vpack.c.bf16 %v2013, %v2012
    %v2024 = vpack.c.bf16 %v2015, %v2014
    %v2025 = vpack.c.bf16 %v2017, %v2016
    %2026 = vmatprep.subr.bf16.mxu0 0
    %2027 = vmatpush1.bf16.msra.mxu0 %v694
    %2028 = vmatprep.subr.bf16.mxu0 0
    %2029 = vmatpush1.bf16.msra.mxu0 %v695
    %2030 = vmatprep.subr.bf16.mxu0 0
    %2031 = vmatpush1.bf16.msra.mxu0 %v696
    %2032 = vmatprep.subr.bf16.mxu0 0
    %2033 = vmatpush1.bf16.msra.mxu0 %v697
    %2034 = vmatprep.subr.bf16.mxu0 0
    %2035 = vmatpush1.bf16.msra.mxu0 %v698
    %2036 = vmatprep.subr.bf16.mxu0 0
    %2037 = vmatpush1.bf16.msra.mxu0 %v699
    %2038 = vmatprep.subr.bf16.mxu0 0
    %2039 = vmatpush1.bf16.msra.mxu0 %v700
    %2040 = vmatprep.subr.bf16.mxu0 0
    %2041 = vmatpush1.bf16.msra.mxu0 %v701
    %2042 = vmatprep.subr.bf16.mxu0 0
    %2043 = vmatpush1.bf16.msra.mxu0 0
    %2044 = vmatprep.subr.bf16.mxu0 0
    %2045 = vmatpush1.bf16.msra.mxu0 0
    %2046 = vmatprep.subr.bf16.mxu0 0
    %2047 = vmatpush1.bf16.msra.mxu0 0
    %2048 = vmatprep.subr.bf16.mxu0 0
    %2049 = vmatpush1.bf16.msra.mxu0 0
    %2050 = vmatprep.subr.bf16.mxu0 0
    %2051 = vmatpush1.bf16.msra.mxu0 0
    %2052 = vmatprep.subr.bf16.mxu0 0
    %2053 = vmatpush1.bf16.msra.mxu0 0
    %2054 = vmatprep.subr.bf16.mxu0 0
    %2055 = vmatpush1.bf16.msra.mxu0 0
    %2056 = vmatprep.subr.bf16.mxu0 0
    %2057 = vmatpush1.bf16.msra.mxu0 0
    %2058 = vmatprep.mubr.bf16.mxu0 0
    %2059 = vmatmul.mubr.bf16.gmra.mrb[0].mxu0 %v2018
    %v2060 = vpop.f32.mrb[0].mxu0
    %v2061 = vadd.f32 %v660, %v2060
    %v2062 = vpop.f32.mrb[0].mxu0
    %v2063 = vpop.f32.mrb[0].mxu0
    %v2064 = vadd.f32 %v660, %v2063
    %v2065 = vpop.f32.mrb[0].mxu0
    %2066 = vmatprep.mubr.bf16.mxu0 0
    %2067 = vmatmul.mubr.bf16.gmra.mrb[0].mxu0 %v2019
    %v2068 = vpop.f32.mrb[0].mxu0
    %v2069 = vadd.f32 %v660, %v2068
    %v2070 = vpop.f32.mrb[0].mxu0
    %v2071 = vpop.f32.mrb[0].mxu0
    %v2072 = vadd.f32 %v660, %v2071
    %v2073 = vpop.f32.mrb[0].mxu0
    %2074 = vmatprep.mubr.bf16.mxu0 0
    %2075 = vmatmul.mubr.bf16.gmra.mrb[0].mxu0 %v2020
    %v2076 = vpop.f32.mrb[0].mxu0
    %v2077 = vadd.f32 %v660, %v2076
    %v2078 = vpop.f32.mrb[0].mxu0
    %v2079 = vpop.f32.mrb[0].mxu0
    %v2080 = vadd.f32 %v660, %v2079
    %v2081 = vpop.f32.mrb[0].mxu0
    %2082 = vmatprep.mubr.bf16.mxu0 0
    %2083 = vmatmul.mubr.bf16.gmra.mrb[0].mxu0 %v2021
    %v2084 = vpop.f32.mrb[0].mxu0
    %v2085 = vadd.f32 %v660, %v2084
    %v2086 = vpop.f32.mrb[0].mxu0
    %v2087 = vpop.f32.mrb[0].mxu0
    %v2088 = vadd.f32 %v660, %v2087
    %v2089 = vpop.f32.mrb[0].mxu0
    %2090 = vmatprep.mubr.bf16.mxu0 0
    %2091 = vmatmul.mubr.bf16.gmra.mrb[0].mxu0 %v2022
    %v2092 = vpop.f32.mrb[0].mxu0
    %v2093 = vadd.f32 %v660, %v2092
    %v2094 = vpop.f32.mrb[0].mxu0
    %v2095 = vpop.f32.mrb[0].mxu0
    %v2096 = vadd.f32 %v660, %v2095
    %v2097 = vpop.f32.mrb[0].mxu0
    %2098 = vmatprep.mubr.bf16.mxu0 0
    %2099 = vmatmul.mubr.bf16.gmra.mrb[0].mxu0 %v2023
    %v2100 = vpop.f32.mrb[0].mxu0
    %v2101 = vadd.f32 %v660, %v2100
    %v2102 = vpop.f32.mrb[0].mxu0
    %v2103 = vpop.f32.mrb[0].mxu0
    %v2104 = vadd.f32 %v660, %v2103
    %v2105 = vpop.f32.mrb[0].mxu0
    %2106 = vmatprep.mubr.bf16.mxu0 0
    %2107 = vmatmul.mubr.bf16.gmra.mrb[0].mxu0 %v2024
    %v2108 = vpop.f32.mrb[0].mxu0
    %v2109 = vadd.f32 %v660, %v2108
    %v2110 = vpop.f32.mrb[0].mxu0
    %v2111 = vpop.f32.mrb[0].mxu0
    %v2112 = vadd.f32 %v660, %v2111
    %v2113 = vpop.f32.mrb[0].mxu0
    %2114 = vmatprep.mubr.bf16.mxu0 0
    %2115 = vmatmul.mubr.bf16.gmra.mrb[0].mxu0 %v2025
    %v2116 = vpop.f32.mrb[0].mxu0
    %v2117 = vadd.f32 %v660, %v2116
    %v2118 = vpop.f32.mrb[0].mxu0
    %v2119 = vpop.f32.mrb[0].mxu0
    %v2120 = vadd.f32 %v660, %v2119
    %v2121 = vpop.f32.mrb[0].mxu0
    %2122 = vdwg.mxu0
    %v2123 = vpack.c.bf16 %v2064, %v2061
    %v2124 = vpack.c.bf16 %v2072, %v2069
    %v2125 = vpack.c.bf16 %v2080, %v2077
    %v2126 = vpack.c.bf16 %v2088, %v2085
    %v2127 = vpack.c.bf16 %v2096, %v2093
    %v2128 = vpack.c.bf16 %v2104, %v2101
    %v2129 = vpack.c.bf16 %v2112, %v2109
    %v2130 = vpack.c.bf16 %v2120, %v2117
    %2131 = vmatprep.subr.bf16.mxu0 0
    %2132 = vmatpush1.bf16.msra.mxu0 %v872
    %2133 = vmatprep.subr.bf16.mxu0 0
    %2134 = vmatpush1.bf16.msra.mxu0 %v873
    %2135 = vmatprep.subr.bf16.mxu0 0
    %2136 = vmatpush1.bf16.msra.mxu0 %v874
    %2137 = vmatprep.subr.bf16.mxu0 0
    %2138 = vmatpush1.bf16.msra.mxu0 %v875
    %2139 = vmatprep.subr.bf16.mxu0 0
    %2140 = vmatpush1.bf16.msra.mxu0 %v876
    %2141 = vmatprep.subr.bf16.mxu0 0
    %2142 = vmatpush1.bf16.msra.mxu0 %v877
    %2143 = vmatprep.subr.bf16.mxu0 0
    %2144 = vmatpush1.bf16.msra.mxu0 %v878
    %2145 = vmatprep.subr.bf16.mxu0 0
    %2146 = vmatpush1.bf16.msra.mxu0 %v879
    %2147 = vmatprep.subr.bf16.mxu0 0
    %2148 = vmatpush1.bf16.msra.mxu0 0
    %2149 = vmatprep.subr.bf16.mxu0 0
    %2150 = vmatpush1.bf16.msra.mxu0 0
    %2151 = vmatprep.subr.bf16.mxu0 0
    %2152 = vmatpush1.bf16.msra.mxu0 0
    %2153 = vmatprep.subr.bf16.mxu0 0
    %2154 = vmatpush1.bf16.msra.mxu0 0
    %2155 = vmatprep.subr.bf16.mxu0 0
    %2156 = vmatpush1.bf16.msra.mxu0 0
    %2157 = vmatprep.subr.bf16.mxu0 0
    %2158 = vmatpush1.bf16.msra.mxu0 0
    %2159 = vmatprep.subr.bf16.mxu0 0
    %2160 = vmatpush1.bf16.msra.mxu0 0
    %2161 = vmatprep.subr.bf16.mxu0 0
    %2162 = vmatpush1.bf16.msra.mxu0 0
    %2163 = vmatprep.mubr.bf16.mxu0 0
    %2164 = vmatmul.mubr.bf16.gmra.mrb[0].mxu0 %v2123
    %v2165 = vpop.f32.mrb[0].mxu0
    %v2166 = vadd.f32 %v838, %v2165
    %v2167 = vpop.f32.mrb[0].mxu0
    %v2168 = vpop.f32.mrb[0].mxu0
    %v2169 = vadd.f32 %v838, %v2168
    %v2170 = vpop.f32.mrb[0].mxu0
    %2171 = vmatprep.mubr.bf16.mxu0 0
    %2172 = vmatmul.mubr.bf16.gmra.mrb[0].mxu0 %v2124
    %v2173 = vpop.f32.mrb[0].mxu0
    %v2174 = vadd.f32 %v838, %v2173
    %v2175 = vpop.f32.mrb[0].mxu0
    %v2176 = vpop.f32.mrb[0].mxu0
    %v2177 = vadd.f32 %v838, %v2176
    %v2178 = vpop.f32.mrb[0].mxu0
    %2179 = vmatprep.mubr.bf16.mxu0 0
    %2180 = vmatmul.mubr.bf16.gmra.mrb[0].mxu0 %v2125
    %v2181 = vpop.f32.mrb[0].mxu0
    %v2182 = vadd.f32 %v838, %v2181
    %v2183 = vpop.f32.mrb[0].mxu0
    %v2184 = vpop.f32.mrb[0].mxu0
    %v2185 = vadd.f32 %v838, %v2184
    %v2186 = vpop.f32.mrb[0].mxu0
    %2187 = vmatprep.mubr.bf16.mxu0 0
    %2188 = vmatmul.mubr.bf16.gmra.mrb[0].mxu0 %v2126
    %v2189 = vpop.f32.mrb[0].mxu0
    %v2190 = vadd.f32 %v838, %v2189
    %v2191 = vpop.f32.mrb[0].mxu0
    %v2192 = vpop.f32.mrb[0].mxu0
    %v2193 = vadd.f32 %v838, %v2192
    %v2194 = vpop.f32.mrb[0].mxu0
    %2195 = vmatprep.mubr.bf16.mxu0 0
    %2196 = vmatmul.mubr.bf16.gmra.mrb[0].mxu0 %v2127
    %v2197 = vpop.f32.mrb[0].mxu0
    %v2198 = vadd.f32 %v838, %v2197
    %v2199 = vpop.f32.mrb[0].mxu0
    %v2200 = vpop.f32.mrb[0].mxu0
    %v2201 = vadd.f32 %v838, %v2200
    %v2202 = vpop.f32.mrb[0].mxu0
    %2203 = vmatprep.mubr.bf16.mxu0 0
    %2204 = vmatmul.mubr.bf16.gmra.mrb[0].mxu0 %v2128
    %v2205 = vpop.f32.mrb[0].mxu0
    %v2206 = vadd.f32 %v838, %v2205
    %v2207 = vpop.f32.mrb[0].mxu0
    %v2208 = vpop.f32.mrb[0].mxu0
    %v2209 = vadd.f32 %v838, %v2208
    %v2210 = vpop.f32.mrb[0].mxu0
    %2211 = vmatprep.mubr.bf16.mxu0 0
    %2212 = vmatmul.mubr.bf16.gmra.mrb[0].mxu0 %v2129
    %v2213 = vpop.f32.mrb[0].mxu0
    %v2214 = vadd.f32 %v838, %v2213
    %v2215 = vpop.f32.mrb[0].mxu0
    %v2216 = vpop.f32.mrb[0].mxu0
    %v2217 = vadd.f32 %v838, %v2216
    %v2218 = vpop.f32.mrb[0].mxu0
    %2219 = vmatprep.mubr.bf16.mxu0 0
    %2220 = vmatmul.mubr.bf16.gmra.mrb[0].mxu0 %v2130
    %v2221 = vpop.f32.mrb[0].mxu0
    %v2222 = vadd.f32 %v838, %v2221
    %v2223 = vpop.f32.mrb[0].mxu0
    %v2224 = vpop.f32.mrb[0].mxu0
    %v2225 = vadd.f32 %v838, %v2224
    %v2226 = vpop.f32.mrb[0].mxu0
    %2227 = vdwg.mxu0
    %v2228 = vmax.f32 %v2166, 0.0
    %v2229 = vmax.f32 %v2169, 0.0
    %v2230 = vmax.f32 %v2174, 0.0
    %v2231 = vmax.f32 %v2177, 0.0
    %v2232 = vmax.f32 %v2182, 0.0
    %v2233 = vmax.f32 %v2185, 0.0
    %v2234 = vmax.f32 %v2190, 0.0
    %v2235 = vmax.f32 %v2193, 0.0
    %v2236 = vmax.f32 %v2198, 0.0
    %v2237 = vmax.f32 %v2201, 0.0
    %v2238 = vmax.f32 %v2206, 0.0
    %v2239 = vmax.f32 %v2209, 0.0
    %v2240 = vmax.f32 %v2214, 0.0
    %v2241 = vmax.f32 %v2217, 0.0
    %v2242 = vmax.f32 %v2222, 0.0
    %v2243 = vmax.f32 %v2225, 0.0
    %v2244 = vpack.c.bf16 %v2229, %v2228
    %v2245 = vpack.c.bf16 %v2231, %v2230
    %v2246 = vpack.c.bf16 %v2233, %v2232
    %v2247 = vpack.c.bf16 %v2235, %v2234
    %v2248 = vpack.c.bf16 %v2237, %v2236
    %v2249 = vpack.c.bf16 %v2239, %v2238
    %v2250 = vpack.c.bf16 %v2241, %v2240
    %v2251 = vpack.c.bf16 %v2243, %v2242
    %2252 = vmatprep.subr.bf16.mxu0 0
    %2253 = vmatpush1.bf16.msra.mxu0 %v1066
    %2254 = vmatprep.subr.bf16.mxu0 0
    %2255 = vmatpush1.bf16.msra.mxu0 %v1067
    %2256 = vmatprep.subr.bf16.mxu0 0
    %2257 = vmatpush1.bf16.msra.mxu0 %v1068
    %2258 = vmatprep.subr.bf16.mxu0 0
    %2259 = vmatpush1.bf16.msra.mxu0 %v1069
    %2260 = vmatprep.subr.bf16.mxu0 0
    %2261 = vmatpush1.bf16.msra.mxu0 %v1070
    %2262 = vmatprep.subr.bf16.mxu0 0
    %2263 = vmatpush1.bf16.msra.mxu0 %v1071
    %2264 = vmatprep.subr.bf16.mxu0 0
    %2265 = vmatpush1.bf16.msra.mxu0 %v1072
    %2266 = vmatprep.subr.bf16.mxu0 0
    %2267 = vmatpush1.bf16.msra.mxu0 %v1073
    %2268 = vmatprep.subr.bf16.mxu0 0
    %2269 = vmatpush1.bf16.msra.mxu0 0
    %2270 = vmatprep.subr.bf16.mxu0 0
    %2271 = vmatpush1.bf16.msra.mxu0 0
    %2272 = vmatprep.subr.bf16.mxu0 0
    %2273 = vmatpush1.bf16.msra.mxu0 0
    %2274 = vmatprep.subr.bf16.mxu0 0
    %2275 = vmatpush1.bf16.msra.mxu0 0
    %2276 = vmatprep.subr.bf16.mxu0 0
    %2277 = vmatpush1.bf16.msra.mxu0 0
    %2278 = vmatprep.subr.bf16.mxu0 0
    %2279 = vmatpush1.bf16.msra.mxu0 0
    %2280 = vmatprep.subr.bf16.mxu0 0
    %2281 = vmatpush1.bf16.msra.mxu0 0
    %2282 = vmatprep.subr.bf16.mxu0 0
    %2283 = vmatpush1.bf16.msra.mxu0 0
    %2284 = vmatprep.mubr.bf16.mxu0 0
    %2285 = vmatmul.mubr.bf16.gmra.mrb[0].mxu0 %v2244
    %v2286 = vpop.f32.mrb[0].mxu0
    %v2287 = vadd.f32 %v1032, %v2286
    %v2288 = vpop.f32.mrb[0].mxu0
    %v2289 = vpop.f32.mrb[0].mxu0
    %v2290 = vadd.f32 %v1032, %v2289
    %v2291 = vpop.f32.mrb[0].mxu0
    %2292 = vmatprep.mubr.bf16.mxu0 0
    %2293 = vmatmul.mubr.bf16.gmra.mrb[0].mxu0 %v2245
    %v2294 = vpop.f32.mrb[0].mxu0
    %v2295 = vadd.f32 %v1032, %v2294
    %v2296 = vpop.f32.mrb[0].mxu0
    %v2297 = vpop.f32.mrb[0].mxu0
    %v2298 = vadd.f32 %v1032, %v2297
    %v2299 = vpop.f32.mrb[0].mxu0
    %2300 = vmatprep.mubr.bf16.mxu0 0
    %2301 = vmatmul.mubr.bf16.gmra.mrb[0].mxu0 %v2246
    %v2302 = vpop.f32.mrb[0].mxu0
    %v2303 = vadd.f32 %v1032, %v2302
    %v2304 = vpop.f32.mrb[0].mxu0
    %v2305 = vpop.f32.mrb[0].mxu0
    %v2306 = vadd.f32 %v1032, %v2305
    %v2307 = vpop.f32.mrb[0].mxu0
    %2308 = vmatprep.mubr.bf16.mxu0 0
    %2309 = vmatmul.mubr.bf16.gmra.mrb[0].mxu0 %v2247
    %v2310 = vpop.f32.mrb[0].mxu0
    %v2311 = vadd.f32 %v1032, %v2310
    %v2312 = vpop.f32.mrb[0].mxu0
    %v2313 = vpop.f32.mrb[0].mxu0
    %v2314 = vadd.f32 %v1032, %v2313
    %v2315 = vpop.f32.mrb[0].mxu0
    %2316 = vmatprep.mubr.bf16.mxu0 0
    %2317 = vmatmul.mubr.bf16.gmra.mrb[0].mxu0 %v2248
    %v2318 = vpop.f32.mrb[0].mxu0
    %v2319 = vadd.f32 %v1032, %v2318
    %v2320 = vpop.f32.mrb[0].mxu0
    %v2321 = vpop.f32.mrb[0].mxu0
    %v2322 = vadd.f32 %v1032, %v2321
    %v2323 = vpop.f32.mrb[0].mxu0
    %2324 = vmatprep.mubr.bf16.mxu0 0
    %2325 = vmatmul.mubr.bf16.gmra.mrb[0].mxu0 %v2249
    %v2326 = vpop.f32.mrb[0].mxu0
    %v2327 = vadd.f32 %v1032, %v2326
    %v2328 = vpop.f32.mrb[0].mxu0
    %v2329 = vpop.f32.mrb[0].mxu0
    %v2330 = vadd.f32 %v1032, %v2329
    %v2331 = vpop.f32.mrb[0].mxu0
    %2332 = vmatprep.mubr.bf16.mxu0 0
    %2333 = vmatmul.mubr.bf16.gmra.mrb[0].mxu0 %v2250
    %v2334 = vpop.f32.mrb[0].mxu0
    %v2335 = vadd.f32 %v1032, %v2334
    %v2336 = vpop.f32.mrb[0].mxu0
    %v2337 = vpop.f32.mrb[0].mxu0
    %v2338 = vadd.f32 %v1032, %v2337
    %v2339 = vpop.f32.mrb[0].mxu0
    %2340 = vmatprep.mubr.bf16.mxu0 0
    %2341 = vmatmul.mubr.bf16.gmra.mrb[0].mxu0 %v2251
    %v2342 = vpop.f32.mrb[0].mxu0
    %v2343 = vadd.f32 %v1032, %v2342
    %v2344 = vpop.f32.mrb[0].mxu0
    %v2345 = vpop.f32.mrb[0].mxu0
    %v2346 = vadd.f32 %v1032, %v2345
    %v2347 = vpop.f32.mrb[0].mxu0
    %2348 = vdwg.mxu0
    %v2349 = vmax.f32 %v2287, 0.0
    %v2350 = vmax.f32 %v2290, 0.0
    %v2351 = vmax.f32 %v2295, 0.0
    %v2352 = vmax.f32 %v2298, 0.0
    %v2353 = vmax.f32 %v2303, 0.0
    %v2354 = vmax.f32 %v2306, 0.0
    %v2355 = vmax.f32 %v2311, 0.0
    %v2356 = vmax.f32 %v2314, 0.0
    %v2357 = vmax.f32 %v2319, 0.0
    %v2358 = vmax.f32 %v2322, 0.0
    %v2359 = vmax.f32 %v2327, 0.0
    %v2360 = vmax.f32 %v2330, 0.0
    %v2361 = vmax.f32 %v2335, 0.0
    %v2362 = vmax.f32 %v2338, 0.0
    %v2363 = vmax.f32 %v2343, 0.0
    %v2364 = vmax.f32 %v2346, 0.0
    %v2365 = vpack.c.bf16 %v2350, %v2349
    %v2366 = vpack.c.bf16 %v2352, %v2351
    %v2367 = vpack.c.bf16 %v2354, %v2353
    %v2368 = vpack.c.bf16 %v2356, %v2355
    %v2369 = vpack.c.bf16 %v2358, %v2357
    %v2370 = vpack.c.bf16 %v2360, %v2359
    %v2371 = vpack.c.bf16 %v2362, %v2361
    %v2372 = vpack.c.bf16 %v2364, %v2363
    %2373 = vmatprep.subr.bf16.mxu0 0
    %2374 = vmatpush1.bf16.msra.mxu0 %v1260
    %2375 = vmatprep.subr.bf16.mxu0 0
    %2376 = vmatpush1.bf16.msra.mxu0 %v1261
    %2377 = vmatprep.subr.bf16.mxu0 0
    %2378 = vmatpush1.bf16.msra.mxu0 %v1262
    %2379 = vmatprep.subr.bf16.mxu0 0
    %2380 = vmatpush1.bf16.msra.mxu0 %v1263
    %2381 = vmatprep.subr.bf16.mxu0 0
    %2382 = vmatpush1.bf16.msra.mxu0 %v1264
    %2383 = vmatprep.subr.bf16.mxu0 0
    %2384 = vmatpush1.bf16.msra.mxu0 %v1265
    %2385 = vmatprep.subr.bf16.mxu0 0
    %2386 = vmatpush1.bf16.msra.mxu0 %v1266
    %2387 = vmatprep.subr.bf16.mxu0 0
    %2388 = vmatpush1.bf16.msra.mxu0 %v1267
    %2389 = vmatprep.subr.bf16.mxu0 0
    %2390 = vmatpush1.bf16.msra.mxu0 0
    %2391 = vmatprep.subr.bf16.mxu0 0
    %2392 = vmatpush1.bf16.msra.mxu0 0
    %2393 = vmatprep.subr.bf16.mxu0 0
    %2394 = vmatpush1.bf16.msra.mxu0 0
    %2395 = vmatprep.subr.bf16.mxu0 0
    %2396 = vmatpush1.bf16.msra.mxu0 0
    %2397 = vmatprep.subr.bf16.mxu0 0
    %2398 = vmatpush1.bf16.msra.mxu0 0
    %2399 = vmatprep.subr.bf16.mxu0 0
    %2400 = vmatpush1.bf16.msra.mxu0 0
    %2401 = vmatprep.subr.bf16.mxu0 0
    %2402 = vmatpush1.bf16.msra.mxu0 0
    %2403 = vmatprep.subr.bf16.mxu0 0
    %2404 = vmatpush1.bf16.msra.mxu0 0
    %2405 = vmatprep.mubr.bf16.mxu0 0
    %2406 = vmatmul.mubr.bf16.gmra.mrb[0].mxu0 %v2365
    %v2407 = vpop.f32.mrb[0].mxu0
    %v2408 = vadd.f32 %v1226, %v2407
    %v2409 = vpop.f32.mrb[0].mxu0
    %v2410 = vpop.f32.mrb[0].mxu0
    %v2411 = vadd.f32 %v1226, %v2410
    %v2412 = vpop.f32.mrb[0].mxu0
    %2413 = vmatprep.mubr.bf16.mxu0 0
    %2414 = vmatmul.mubr.bf16.gmra.mrb[0].mxu0 %v2366
    %v2415 = vpop.f32.mrb[0].mxu0
    %v2416 = vadd.f32 %v1226, %v2415
    %v2417 = vpop.f32.mrb[0].mxu0
    %v2418 = vpop.f32.mrb[0].mxu0
    %v2419 = vadd.f32 %v1226, %v2418
    %v2420 = vpop.f32.mrb[0].mxu0
    %2421 = vmatprep.mubr.bf16.mxu0 0
    %2422 = vmatmul.mubr.bf16.gmra.mrb[0].mxu0 %v2367
    %v2423 = vpop.f32.mrb[0].mxu0
    %v2424 = vadd.f32 %v1226, %v2423
    %v2425 = vpop.f32.mrb[0].mxu0
    %v2426 = vpop.f32.mrb[0].mxu0
    %v2427 = vadd.f32 %v1226, %v2426
    %v2428 = vpop.f32.mrb[0].mxu0
    %2429 = vmatprep.mubr.bf16.mxu0 0
    %2430 = vmatmul.mubr.bf16.gmra.mrb[0].mxu0 %v2368
    %v2431 = vpop.f32.mrb[0].mxu0
    %v2432 = vadd.f32 %v1226, %v2431
    %v2433 = vpop.f32.mrb[0].mxu0
    %v2434 = vpop.f32.mrb[0].mxu0
    %v2435 = vadd.f32 %v1226, %v2434
    %v2436 = vpop.f32.mrb[0].mxu0
    %2437 = vmatprep.mubr.bf16.mxu0 0
    %2438 = vmatmul.mubr.bf16.gmra.mrb[0].mxu0 %v2369
    %v2439 = vpop.f32.mrb[0].mxu0
    %v2440 = vadd.f32 %v1226, %v2439
    %v2441 = vpop.f32.mrb[0].mxu0
    %v2442 = vpop.f32.mrb[0].mxu0
    %v2443 = vadd.f32 %v1226, %v2442
    %v2444 = vpop.f32.mrb[0].mxu0
    %2445 = vmatprep.mubr.bf16.mxu0 0
    %2446 = vmatmul.mubr.bf16.gmra.mrb[0].mxu0 %v2370
    %v2447 = vpop.f32.mrb[0].mxu0
    %v2448 = vadd.f32 %v1226, %v2447
    %v2449 = vpop.f32.mrb[0].mxu0
    %v2450 = vpop.f32.mrb[0].mxu0
    %v2451 = vadd.f32 %v1226, %v2450
    %v2452 = vpop.f32.mrb[0].mxu0
    %2453 = vmatprep.mubr.bf16.mxu0 0
    %2454 = vmatmul.mubr.bf16.gmra.mrb[0].mxu0 %v2371
    %v2455 = vpop.f32.mrb[0].mxu0
    %v2456 = vadd.f32 %v1226, %v2455
    %v2457 = vpop.f32.mrb[0].mxu0
    %v2458 = vpop.f32.mrb[0].mxu0
    %v2459 = vadd.f32 %v1226, %v2458
    %v2460 = vpop.f32.mrb[0].mxu0
    %2461 = vmatprep.mubr.bf16.mxu0 0
    %2462 = vmatmul.mubr.bf16.gmra.mrb[0].mxu0 %v2372
    %v2463 = vpop.f32.mrb[0].mxu0
    %v2464 = vadd.f32 %v1226, %v2463
    %v2465 = vpop.f32.mrb[0].mxu0
    %v2466 = vpop.f32.mrb[0].mxu0
    %v2467 = vadd.f32 %v1226, %v2466
    %v2468 = vpop.f32.mrb[0].mxu0
    %2469 = vdwg.mxu0
    %v2470 = vmax.f32 %v2408, 0.0
    %v2471 = vmax.f32 %v2411, 0.0
    %v2472 = vmax.f32 %v2416, 0.0
    %v2473 = vmax.f32 %v2419, 0.0
    %v2474 = vmax.f32 %v2424, 0.0
    %v2475 = vmax.f32 %v2427, 0.0
    %v2476 = vmax.f32 %v2432, 0.0
    %v2477 = vmax.f32 %v2435, 0.0
    %v2478 = vmax.f32 %v2440, 0.0
    %v2479 = vmax.f32 %v2443, 0.0
    %v2480 = vmax.f32 %v2448, 0.0
    %v2481 = vmax.f32 %v2451, 0.0
    %v2482 = vmax.f32 %v2456, 0.0
    %v2483 = vmax.f32 %v2459, 0.0
    %v2484 = vmax.f32 %v2464, 0.0
    %v2485 = vmax.f32 %v2467, 0.0
    %v2486 = vpack.c.bf16 %v2471, %v2470
    %v2487 = vpack.c.bf16 %v2473, %v2472
    %v2488 = vpack.c.bf16 %v2475, %v2474
    %v2489 = vpack.c.bf16 %v2477, %v2476
    %v2490 = vpack.c.bf16 %v2479, %v2478
    %v2491 = vpack.c.bf16 %v2481, %v2480
    %v2492 = vpack.c.bf16 %v2483, %v2482
    %v2493 = vpack.c.bf16 %v2485, %v2484
    %2494 = vmatprep.subr.bf16.mxu0 0
    %2495 = vmatpush1.bf16.msra.mxu0 %v1454
    %2496 = vmatprep.subr.bf16.mxu0 0
    %2497 = vmatpush1.bf16.msra.mxu0 %v1455
    %2498 = vmatprep.subr.bf16.mxu0 0
    %2499 = vmatpush1.bf16.msra.mxu0 %v1456
    %2500 = vmatprep.subr.bf16.mxu0 0
    %2501 = vmatpush1.bf16.msra.mxu0 %v1457
    %2502 = vmatprep.subr.bf16.mxu0 0
    %2503 = vmatpush1.bf16.msra.mxu0 %v1458
    %2504 = vmatprep.subr.bf16.mxu0 0
    %2505 = vmatpush1.bf16.msra.mxu0 %v1459
    %2506 = vmatprep.subr.bf16.mxu0 0
    %2507 = vmatpush1.bf16.msra.mxu0 %v1460
    %2508 = vmatprep.subr.bf16.mxu0 0
    %2509 = vmatpush1.bf16.msra.mxu0 %v1461
    %2510 = vmatprep.subr.bf16.mxu0 0
    %2511 = vmatpush1.bf16.msra.mxu0 0
    %2512 = vmatprep.subr.bf16.mxu0 0
    %2513 = vmatpush1.bf16.msra.mxu0 0
    %2514 = vmatprep.subr.bf16.mxu0 0
    %2515 = vmatpush1.bf16.msra.mxu0 0
    %2516 = vmatprep.subr.bf16.mxu0 0
    %2517 = vmatpush1.bf16.msra.mxu0 0
    %2518 = vmatprep.subr.bf16.mxu0 0
    %2519 = vmatpush1.bf16.msra.mxu0 0
    %2520 = vmatprep.subr.bf16.mxu0 0
    %2521 = vmatpush1.bf16.msra.mxu0 0
    %2522 = vmatprep.subr.bf16.mxu0 0
    %2523 = vmatpush1.bf16.msra.mxu0 0
    %2524 = vmatprep.subr.bf16.mxu0 0
    %2525 = vmatpush1.bf16.msra.mxu0 0
    %2526 = vmatprep.mubr.bf16.mxu0 0
    %2527 = vmatmul.mubr.bf16.gmra.mrb[0].mxu0 %v2486
    %v2528 = vpop.f32.mrb[0].mxu0
    %v2529 = vadd.f32 %v1420, %v2528
    %v2530 = vpop.f32.mrb[0].mxu0
    %v2531 = vpop.f32.mrb[0].mxu0
    %v2532 = vadd.f32 %v1420, %v2531
    %v2533 = vpop.f32.mrb[0].mxu0
    %2534 = vmatprep.mubr.bf16.mxu0 0
    %2535 = vmatmul.mubr.bf16.gmra.mrb[0].mxu0 %v2487
    %v2536 = vpop.f32.mrb[0].mxu0
    %v2537 = vadd.f32 %v1420, %v2536
    %v2538 = vpop.f32.mrb[0].mxu0
    %v2539 = vpop.f32.mrb[0].mxu0
    %v2540 = vadd.f32 %v1420, %v2539
    %v2541 = vpop.f32.mrb[0].mxu0
    %2542 = vmatprep.mubr.bf16.mxu0 0
    %2543 = vmatmul.mubr.bf16.gmra.mrb[0].mxu0 %v2488
    %v2544 = vpop.f32.mrb[0].mxu0
    %v2545 = vadd.f32 %v1420, %v2544
    %v2546 = vpop.f32.mrb[0].mxu0
    %v2547 = vpop.f32.mrb[0].mxu0
    %v2548 = vadd.f32 %v1420, %v2547
    %v2549 = vpop.f32.mrb[0].mxu0
    %2550 = vmatprep.mubr.bf16.mxu0 0
    %2551 = vmatmul.mubr.bf16.gmra.mrb[0].mxu0 %v2489
    %v2552 = vpop.f32.mrb[0].mxu0
    %v2553 = vadd.f32 %v1420, %v2552
    %v2554 = vpop.f32.mrb[0].mxu0
    %v2555 = vpop.f32.mrb[0].mxu0
    %v2556 = vadd.f32 %v1420, %v2555
    %v2557 = vpop.f32.mrb[0].mxu0
    %2558 = vmatprep.mubr.bf16.mxu0 0
    %2559 = vmatmul.mubr.bf16.gmra.mrb[0].mxu0 %v2490
    %v2560 = vpop.f32.mrb[0].mxu0
    %v2561 = vadd.f32 %v1420, %v2560
    %v2562 = vpop.f32.mrb[0].mxu0
    %v2563 = vpop.f32.mrb[0].mxu0
    %v2564 = vadd.f32 %v1420, %v2563
    %v2565 = vpop.f32.mrb[0].mxu0
    %2566 = vmatprep.mubr.bf16.mxu0 0
    %2567 = vmatmul.mubr.bf16.gmra.mrb[0].mxu0 %v2491
    %v2568 = vpop.f32.mrb[0].mxu0
    %v2569 = vadd.f32 %v1420, %v2568
    %v2570 = vpop.f32.mrb[0].mxu0
    %v2571 = vpop.f32.mrb[0].mxu0
    %v2572 = vadd.f32 %v1420, %v2571
    %v2573 = vpop.f32.mrb[0].mxu0
    %2574 = vmatprep.mubr.bf16.mxu0 0
    %2575 = vmatmul.mubr.bf16.gmra.mrb[0].mxu0 %v2492
    %v2576 = vpop.f32.mrb[0].mxu0
    %v2577 = vadd.f32 %v1420, %v2576
    %v2578 = vpop.f32.mrb[0].mxu0
    %v2579 = vpop.f32.mrb[0].mxu0
    %v2580 = vadd.f32 %v1420, %v2579
    %v2581 = vpop.f32.mrb[0].mxu0
    %2582 = vmatprep.mubr.bf16.mxu0 0
    %2583 = vmatmul.mubr.bf16.gmra.mrb[0].mxu0 %v2493
    %v2584 = vpop.f32.mrb[0].mxu0
    %v2585 = vadd.f32 %v1420, %v2584
    %v2586 = vpop.f32.mrb[0].mxu0
    %v2587 = vpop.f32.mrb[0].mxu0
    %v2588 = vadd.f32 %v1420, %v2587
    %v2589 = vpop.f32.mrb[0].mxu0
    %2590 = vdwg.mxu0
    %v2591 = vadd.f32 %v2061, %v2529
    %v2592 = vadd.f32 %v2064, %v2532
    %v2593 = vadd.f32 %v2069, %v2537
    %v2594 = vadd.f32 %v2072, %v2540
    %v2595 = vadd.f32 %v2077, %v2545
    %v2596 = vadd.f32 %v2080, %v2548
    %v2597 = vadd.f32 %v2085, %v2553
    %v2598 = vadd.f32 %v2088, %v2556
    %v2599 = vadd.f32 %v2093, %v2561
    %v2600 = vadd.f32 %v2096, %v2564
    %v2601 = vadd.f32 %v2101, %v2569
    %v2602 = vadd.f32 %v2104, %v2572
    %v2603 = vadd.f32 %v2109, %v2577
    %v2604 = vadd.f32 %v2112, %v2580
    %v2605 = vadd.f32 %v2117, %v2585
    %v2606 = vadd.f32 %v2120, %v2588
    %2607 = vst [vmem:[#allocation5] sm:$0xff] %v1567
    %2608 = vst [vmem:[#allocation5 + $0x8] sm:$0xff] %v1568
    %2609 = vst [vmem:[#allocation5 + $0x10] sm:$0xff] %v1569
    %2610 = vst [vmem:[#allocation5 + $0x18] sm:$0xff] %v1570
    %2611 = vst [vmem:[#allocation5 + $0x20] sm:$0xff] %v1571
    %2612 = vst [vmem:[#allocation5 + $0x28] sm:$0xff] %v1572
    %2613 = vst [vmem:[#allocation5 + $0x30] sm:$0xff] %v1573
    %2614 = vst [vmem:[#allocation5 + $0x38] sm:$0xff] %v1574
    %2615 = vst [vmem:[#allocation5 + $0x40] sm:$0xff] %v1575
    %2616 = vst [vmem:[#allocation5 + $0x48] sm:$0xff] %v1576
    %2617 = vst [vmem:[#allocation5 + $0x50] sm:$0xff] %v1577
    %2618 = vst [vmem:[#allocation5 + $0x58] sm:$0xff] %v1578
    %2619 = vst [vmem:[#allocation5 + $0x60] sm:$0xff] %v1579
    %2620 = vst [vmem:[#allocation5 + $0x68] sm:$0xff] %v1580
    %2621 = vst [vmem:[#allocation5 + $0x70] sm:$0xff] %v1581
    %2622 = vst [vmem:[#allocation5 + $0x78] sm:$0xff] %v1582
    %2623 = vst [vmem:[#allocation5 + $0x80] sm:$0xff] %v2591
    %2624 = vst [vmem:[#allocation5 + $0x88] sm:$0xff] %v2592
    %2625 = vst [vmem:[#allocation5 + $0x90] sm:$0xff] %v2593
    %2626 = vst [vmem:[#allocation5 + $0x98] sm:$0xff] %v2594
    %2627 = vst [vmem:[#allocation5 + $0xa0] sm:$0xff] %v2595
    %2628 = vst [vmem:[#allocation5 + $0xa8] sm:$0xff] %v2596
    %2629 = vst [vmem:[#allocation5 + $0xb0] sm:$0xff] %v2597
    %2630 = vst [vmem:[#allocation5 + $0xb8] sm:$0xff] %v2598
    %2631 = vst [vmem:[#allocation5 + $0xc0] sm:$0xff] %v2599
    %2632 = vst [vmem:[#allocation5 + $0xc8] sm:$0xff] %v2600
    %2633 = vst [vmem:[#allocation5 + $0xd0] sm:$0xff] %v2601
    %2634 = vst [vmem:[#allocation5 + $0xd8] sm:$0xff] %v2602
    %2635 = vst [vmem:[#allocation5 + $0xe0] sm:$0xff] %v2603
    %2636 = vst [vmem:[#allocation5 + $0xe8] sm:$0xff] %v2604
    %2637 = vst [vmem:[#allocation5 + $0xf0] sm:$0xff] %v2605
    %2638 = vst [vmem:[#allocation5 + $0xf8] sm:$0xff] %v2606
    // Predicated region
    $region22: #{tpu_custom_call.1} parent=1 // pred_check
      _
    $region23: #{tpu_custom_call.1} parent=1 // pred_check_branch
      %2640 = sbr.rel (0) target = $region25
    $region24: #{tpu_custom_call.1} parent=1 // pred_region
      %s2642 = ssub.s32 4096, 4096
      %2643 = vsyncadd [#allocation4], %s2642
      %s2644 = sshll.u32 [#allocation5], 4
      %s2645 = int_to_ptr.vmem [resolvable:$true] %s2644
      %2650 = dma.vmem_to_hbm [thread:$0]  %s2645, 4096, %s4, [#allocation4], 128, 128, 8
    $region25: #{tpu_custom_call.1} parent=1 // pred_fallthru
      _
    // Predicated region
    $region26: #{tpu_custom_call.1} parent=1 // pred_check
      _
    $region27: #{tpu_custom_call.1} parent=1 // pred_check_branch
      %2652 = sbr.rel (0) target = $region29
    $region28: #{tpu_custom_call.1} parent=1 // pred_region
      %2653 = dma.done [#allocation4], 4096
    $region29: #{tpu_custom_call.1} parent=1 // pred_fallthru
      _
    %2654 = vsyncpa [#allocation3], 1
    %2655 = vsyncpa [#allocation4], 1

</llo_original>
